<compile_context>
chip_gen: v7x
topology: tpu7x:2x2x1
jax: 0.10.0
libtpu: 0.0.40
codegen_flags: <defaults>
</compile_context>

<pallas_src>
import functools

import jax
import jax.numpy as jnp
from jax import lax
from jax.experimental import pallas as pl
from jax.experimental.pallas import tpu as pltpu

EPS = 1e-5


def _round_up(x, m):
    return (x + m - 1) // m * m


# ---------------------------------------------------------------------------
# Fused kernel: BN1 -> ReLU -> conv1 -> BN2 -> ReLU -> conv2 -> + residual
# ---------------------------------------------------------------------------
def _resblock_kernel(x_ref, g1_ref, b1_ref, g2_ref, b2_ref, w1_ref, w2_ref,
                     up_ref, dn_ref, grp_ref, out_ref, patch_ref,
                     *, count, WC):
    x = x_ref[...]                      # (N*H, W*Cp) f32, lane dense
    grp = grp_ref[...]                  # (WC, WC) f32, 0/1 channel-group map
    up = up_ref[...]                    # (N*H, N*H) bf16 row-shift (kh=0 tap)
    dn = dn_ref[...]                    # (N*H, N*H) bf16 row-shift (kh=2 tap)

    def bn_scale_shift(v, gamma_row, beta_row):
        # Training-mode BatchNorm (batch stats, biased variance), finalized
        # on the VPU.  The 0/1 group matmul both reduces over the W positions
        # folded into the lane axis and broadcasts the per-channel result
        # back to the folded (w, c) layout.  Two-pass variance.
        mean = jnp.sum(jnp.dot(v, grp, preferred_element_type=jnp.float32),
                       axis=0, keepdims=True) / count
        d = v - mean
        var = jnp.sum(jnp.dot(d * d, grp, preferred_element_type=jnp.float32),
                      axis=0, keepdims=True) / count
        scale = gamma_row * lax.rsqrt(var + EPS)
        shift = beta_row - mean * scale
        return scale, shift

    def make_patch(a):
        # Row-im2col patch (N*H, 3*WC) for a 3x3 stride-1 pad-1 conv.  Row
        # taps for kh=0/2 come from banded 0/1 shift matrices (zeroed at
        # image boundaries -> row halo); the column halo is implicit in the
        # banded weight slab.  Single activation cast to bf16; every patch
        # store is a full-lane, 128-aligned store (no sublane relayouts).
        a_bf = a.astype(jnp.bfloat16)
        patch_ref[:, WC:2 * WC] = a_bf
        patch_ref[:, 0:WC] = jnp.dot(
            up, a_bf, preferred_element_type=jnp.float32).astype(jnp.bfloat16)
        patch_ref[:, 2 * WC:3 * WC] = jnp.dot(
            dn, a_bf, preferred_element_type=jnp.float32).astype(jnp.bfloat16)
        return patch_ref[...]

    # ---- BN1 -> ReLU -> conv1 (one bf16 MXU matmul, f32 accumulation) ------
    scale1, shift1 = bn_scale_shift(x, g1_ref[...], b1_ref[...])
    a1 = jnp.maximum(x * scale1 + shift1, 0.0)
    y1 = jnp.dot(make_patch(a1), w1_ref[...],
                 preferred_element_type=jnp.float32)           # (N*H, WC) f32

    # ---- BN2 -> ReLU -> conv2 + identity residual ---------------------------
    scale2, shift2 = bn_scale_shift(y1, g2_ref[...], b2_ref[...])
    a2 = jnp.maximum(y1 * scale2 + shift2, 0.0)
    y2 = jnp.dot(make_patch(a2), w2_ref[...],
                 preferred_element_type=jnp.float32)

    out_ref[...] = y2 + x


# ---------------------------------------------------------------------------
# Wrapper-side helpers (layout plumbing, parameter folding)
# ---------------------------------------------------------------------------
def _banded_conv_slab(wt, W, C, Cp):
    """(Cout, Cin, 3, 3) PyTorch conv weight -> (3*W*Cp, W*Cp) bf16 slab.

    slab[kh*W*Cp + w_in*Cp + ci, w_out*Cp + co] = wt[co, ci, kh, w_in-w_out+1]
    (zero outside the 3-wide band and for padded channels), so that the
    row-im2col patch @ slab equals the 3x3 stride-1 pad-1 conv in the folded
    (rows, W*Cp) layout.
    """
    # TODO(synk): at real ResNet18 channel counts (>=64) this slab exceeds the
    # scoped-VMEM budget (and v7x's 64 MiB physical VMEM) and inflates the MXU
    # K dim ~5.3x with structural zeros; switch to a dense 9*Cin im2col with
    # Cout tiled to 128 (v5e) / 256 (v6e/v7x) and row-tiling with a 1-row halo.
    wt = jnp.transpose(wt.astype(jnp.float32), (2, 3, 1, 0))     # (kh,kw,ci,co)
    wt = jnp.pad(wt, ((0, 0), (0, 0), (0, Cp - C), (0, Cp - C)))
    band = jnp.stack([jnp.eye(W, W, k=-(kw - 1), dtype=jnp.float32)
                      for kw in range(3)], axis=0)               # (kw,w_in,w_out)
    slab = jnp.einsum("xab,hxio->haibo", band, wt)               # (kh,w_in,ci,w_out,co)
    return slab.reshape(3 * W * Cp, W * Cp).astype(jnp.bfloat16)


@jax.jit
def resblock_forward(x_nchw, params):
    """Pre-activation basic block (identity shortcut), NCHW in / NCHW out."""
    N, C, H, W = x_nchw.shape
    Cout = params["w1"].shape[0]
    assert Cout == C, "identity-shortcut configuration only"
    # TODO(synk): stride != 1 / 1x1-projection shortcut blocks and the
    # ResNet18 stem, avg-pool and linear head are not covered by this kernel.

    Cp = _round_up(C, 8)          # sublane/lane-friendly channel padding
    WC = W * Cp                   # folded last axis (== 128 for the test)
    NH = N * H                    # all images' rows fused into one matmul M
    count = float(N * H * W)      # BatchNorm normalization count

    # ---- layout plumbing: NCHW -> folded, channel-padded (N*H, W*Cp) --------
    x = jnp.transpose(x_nchw, (0, 2, 3, 1)).astype(jnp.float32)
    x = jnp.pad(x, ((0, 0), (0, 0), (0, 0), (0, Cp - C)))
    x2d = x.reshape(NH, WC)

    # banded conv weight slabs (kw / channel taps folded in)
    w1s = _banded_conv_slab(params["w1"], W, C, Cp)
    w2s = _banded_conv_slab(params["w2"], W, C, Cp)

    # BN affine params, channel-padded with zeros and tiled across W
    def fold_vec(v):
        return jnp.tile(jnp.pad(v.astype(jnp.float32), (0, Cp - C)), W)[None, :]
    g1r, b1r = fold_vec(params["g1"]), fold_vec(params["b1"])
    g2r, b2r = fold_vec(params["g2"]), fold_vec(params["b2"])

    # 0/1 channel-group matrix: lanes i, j share a channel iff i == j (mod Cp)
    lane = jnp.arange(WC)
    grp = (lane[:, None] % Cp == lane[None, :] % Cp).astype(jnp.float32)

    # banded row-shift matrices with per-image zero halos
    #   up: out[r] = a[r-1]   (kh = 0 tap), zero at the first row of each image
    #   dn: out[r] = a[r+1]   (kh = 2 tap), zero at the last row of each image
    row = jnp.arange(NH)
    up_mat = (jnp.eye(NH, NH, k=-1, dtype=jnp.float32)
              * (row % H != 0)[:, None]).astype(jnp.bfloat16)
    dn_mat = (jnp.eye(NH, NH, k=1, dtype=jnp.float32)
              * (row % H != H - 1)[:, None]).astype(jnp.bfloat16)

    def full(shape):
        return pl.BlockSpec(shape, lambda i, s=shape: (0,) * len(s))

    out2d = pl.pallas_call(
        functools.partial(_resblock_kernel, count=count, WC=WC),
        grid=(1,),
        in_specs=[full((NH, WC)),
                  full((1, WC)), full((1, WC)), full((1, WC)), full((1, WC)),
                  full((3 * WC, WC)), full((3 * WC, WC)),
                  full((NH, NH)), full((NH, NH)),
                  full((WC, WC))],
        out_specs=full((NH, WC)),
        out_shape=jax.ShapeDtypeStruct((NH, WC), jnp.float32),
        scratch_shapes=[pltpu.VMEM((NH, 3 * WC), jnp.bfloat16)],  # im2col patch
        compiler_params=pltpu.CompilerParams(
            dimension_semantics=("arbitrary",)),
    )(x2d, g1r, b1r, g2r, b2r, w1s, w2s, up_mat, dn_mat, grp)

    out = out2d.reshape(N, H, W, Cp)[:, :, :, :C]
    return jnp.transpose(out, (0, 3, 1, 2))


# ---------------------------------------------------------------------------
# Pure-JAX f32 reference (training-mode BN, exact module semantics)
# ---------------------------------------------------------------------------
def _bn_relu_ref(x, g, b):
    m = jnp.mean(x, axis=(0, 1, 2), keepdims=True)
    v = jnp.mean((x - m) ** 2, axis=(0, 1, 2), keepdims=True)
    y = (x - m) * lax.rsqrt(v + EPS) * g.reshape(1, 1, 1, -1) + b.reshape(1, 1, 1, -1)
    return jnp.maximum(y, 0.0)


def reference_forward(x_nchw, params):
    x = jnp.transpose(x_nchw, (0, 2, 3, 1)).astype(jnp.float32)
    a1 = _bn_relu_ref(x, params["g1"], params["b1"])
    w1 = jnp.transpose(params["w1"], (2, 3, 1, 0))
    y1 = lax.conv_general_dilated(a1, w1, (1, 1), ((1, 1), (1, 1)),
                                  dimension_numbers=("NHWC", "HWIO", "NHWC"))
    a2 = _bn_relu_ref(y1, params["g2"], params["b2"])
    w2 = jnp.transpose(params["w2"], (2, 3, 1, 0))
    y2 = lax.conv_general_dilated(a2, w2, (1, 1), ((1, 1), (1, 1)),
                                  dimension_numbers=("NHWC", "HWIO", "NHWC"))
    return jnp.transpose(y2 + x, (0, 3, 1, 2))


if __name__ == "__main__":
    key = jax.random.PRNGKey(0)
    ks = jax.random.split(key, 7)

    # _ResBlock(in_planes=4, planes=4, stride=1) on x: (2, 4, 16, 16) NCHW
    N, C, H, W = 2, 4, 16, 16
    x = jax.random.normal(ks[0], (N, C, H, W), jnp.float32)
    params = {
        "g1": 1.0 + 0.1 * jax.random.normal(ks[1], (C,), jnp.float32),
        "b1": 0.1 * jax.random.normal(ks[2], (C,), jnp.float32),
        "w1": 0.1 * jax.random.normal(ks[3], (C, C, 3, 3), jnp.float32),
        "g2": 1.0 + 0.1 * jax.random.normal(ks[4], (C,), jnp.float32),
        "b2": 0.1 * jax.random.normal(ks[5], (C,), jnp.float32),
        "w2": 0.1 * jax.random.normal(ks[6], (C, C, 3, 3), jnp.float32),
    }

    out = jax.block_until_ready(resblock_forward(x, params))
    ref = jax.block_until_ready(reference_forward(x, params))

    assert out.shape == (N, C, H, W), out.shape
    max_err = float(jnp.max(jnp.abs(out - ref)))
    # Conv operands feed the MXU in bf16 (f32 accumulation), hence the
    # loosened tolerance vs. a pure-f32 implementation.
    assert jnp.allclose(out, ref, atol=5e-2, rtol=5e-2), f"max abs err {max_err}"
    print("KERNEL_OK")
</pallas_src>

<mosaic_0001>
module attributes {stable_mosaic.version = 11 : i64} {
  func.func @_resblock_kernel(%arg0: i32, %arg1: memref<32x128xf32, #tpu.memory_space<vmem>>, %arg2: memref<1x128xf32, #tpu.memory_space<vmem>>, %arg3: memref<1x128xf32, #tpu.memory_space<vmem>>, %arg4: memref<1x128xf32, #tpu.memory_space<vmem>>, %arg5: memref<1x128xf32, #tpu.memory_space<vmem>>, %arg6: memref<384x128xbf16, #tpu.memory_space<vmem>>, %arg7: memref<384x128xbf16, #tpu.memory_space<vmem>>, %arg8: memref<32x32xbf16, #tpu.memory_space<vmem>>, %arg9: memref<32x32xbf16, #tpu.memory_space<vmem>>, %arg10: memref<128x128xf32, #tpu.memory_space<vmem>>, %arg11: memref<32x128xf32, #tpu.memory_space<vmem>>, %arg12: memref<32x384xbf16, #tpu.memory_space<vmem>>) attributes {dimension_semantics = [#tpu.dimension_semantics<arbitrary>], iteration_bounds = array<i64: 1>, scalar_prefetch = 0 : i64, scratch_operands = 1 : i64, tpu.core_type = #tpu.core_type<tc>, window_params = [{pipeline_mode = #tpu.pipeline_mode<synchronous>, transform_indices = @transform_0, window_bounds = array<i64: 32, 128>}, {pipeline_mode = #tpu.pipeline_mode<synchronous>, transform_indices = @transform_1, window_bounds = array<i64: 1, 128>}, {pipeline_mode = #tpu.pipeline_mode<synchronous>, transform_indices = @transform_2, window_bounds = array<i64: 1, 128>}, {pipeline_mode = #tpu.pipeline_mode<synchronous>, transform_indices = @transform_3, window_bounds = array<i64: 1, 128>}, {pipeline_mode = #tpu.pipeline_mode<synchronous>, transform_indices = @transform_4, window_bounds = array<i64: 1, 128>}, {pipeline_mode = #tpu.pipeline_mode<synchronous>, transform_indices = @transform_5, window_bounds = array<i64: 384, 128>}, {pipeline_mode = #tpu.pipeline_mode<synchronous>, transform_indices = @transform_6, window_bounds = array<i64: 384, 128>}, {pipeline_mode = #tpu.pipeline_mode<synchronous>, transform_indices = @transform_7, window_bounds = array<i64: 32, 32>}, {pipeline_mode = #tpu.pipeline_mode<synchronous>, transform_indices = @transform_8, window_bounds = array<i64: 32, 32>}, {pipeline_mode = #tpu.pipeline_mode<synchronous>, transform_indices = @transform_9, window_bounds = array<i64: 128, 128>}, {pipeline_mode = #tpu.pipeline_mode<synchronous>, transform_indices = @transform_10, window_bounds = array<i64: 32, 128>}]} {
    %c0 = arith.constant 0 : index
    %c0_0 = arith.constant 0 : index
    %0 = vector.load %arg1[%c0, %c0_0] : memref<32x128xf32, #tpu.memory_space<vmem>>, vector<32x128xf32>
    %c0_1 = arith.constant 0 : index
    %c0_2 = arith.constant 0 : index
    %1 = vector.load %arg10[%c0_1, %c0_2] : memref<128x128xf32, #tpu.memory_space<vmem>>, vector<128x128xf32>
    %c0_3 = arith.constant 0 : index
    %c0_4 = arith.constant 0 : index
    %2 = vector.load %arg8[%c0_3, %c0_4] : memref<32x32xbf16, #tpu.memory_space<vmem>>, vector<32x32xbf16>
    %c0_5 = arith.constant 0 : index
    %c0_6 = arith.constant 0 : index
    %3 = vector.load %arg9[%c0_5, %c0_6] : memref<32x32xbf16, #tpu.memory_space<vmem>>, vector<32x32xbf16>
    %c0_7 = arith.constant 0 : index
    %c0_8 = arith.constant 0 : index
    %4 = vector.load %arg2[%c0_7, %c0_8] : memref<1x128xf32, #tpu.memory_space<vmem>>, vector<1x128xf32>
    %c0_9 = arith.constant 0 : index
    %c0_10 = arith.constant 0 : index
    %5 = vector.load %arg3[%c0_9, %c0_10] : memref<1x128xf32, #tpu.memory_space<vmem>>, vector<1x128xf32>
    %cst = arith.constant dense<0.000000e+00> : vector<32x128xf32>
    %6 = tpu.matmul %0, %1, %cst {dimension_numbers = #tpu.dot_dimension_numbers<[1], [0], [0], [1], [0, 0, 1, 1], [], []>} : vector<32x128xf32>, vector<128x128xf32>, vector<32x128xf32> -> vector<32x128xf32>
    %cst_11 = arith.constant dense<0.000000e+00> : vector<128xf32>
    %7 = vector.multi_reduction <add>, %6, %cst_11 [0] : vector<32x128xf32> to vector<128xf32>
    %8 = vector.shape_cast %7 : vector<128xf32> to vector<1x128xf32>
    %cst_12 = arith.constant 5.120000e+02 : f32
    %9 = vector.broadcast %cst_12 : f32 to vector<1x128xf32>
    %10 = arith.divf %8, %9 : vector<1x128xf32>
    %11 = vector.broadcast %10 : vector<1x128xf32> to vector<32x128xf32>
    %12 = arith.subf %0, %11 : vector<32x128xf32>
    %13 = arith.mulf %12, %12 : vector<32x128xf32>
    %cst_13 = arith.constant dense<0.000000e+00> : vector<32x128xf32>
    %14 = tpu.matmul %13, %1, %cst_13 {dimension_numbers = #tpu.dot_dimension_numbers<[1], [0], [0], [1], [0, 0, 1, 1], [], []>} : vector<32x128xf32>, vector<128x128xf32>, vector<32x128xf32> -> vector<32x128xf32>
    %cst_14 = arith.constant dense<0.000000e+00> : vector<128xf32>
    %15 = vector.multi_reduction <add>, %14, %cst_14 [0] : vector<32x128xf32> to vector<128xf32>
    %16 = vector.shape_cast %15 : vector<128xf32> to vector<1x128xf32>
    %cst_15 = arith.constant 5.120000e+02 : f32
    %17 = vector.broadcast %cst_15 : f32 to vector<1x128xf32>
    %18 = arith.divf %16, %17 : vector<1x128xf32>
    %cst_16 = arith.constant 9.99999974E-6 : f32
    %19 = vector.broadcast %cst_16 : f32 to vector<1x128xf32>
    %20 = arith.addf %18, %19 : vector<1x128xf32>
    %21 = math.rsqrt %20 : vector<1x128xf32>
    %22 = arith.mulf %4, %21 : vector<1x128xf32>
    %23 = arith.mulf %10, %22 : vector<1x128xf32>
    %24 = arith.subf %5, %23 : vector<1x128xf32>
    %25 = vector.broadcast %22 : vector<1x128xf32> to vector<32x128xf32>
    %26 = arith.mulf %0, %25 : vector<32x128xf32>
    %27 = vector.broadcast %24 : vector<1x128xf32> to vector<32x128xf32>
    %28 = arith.addf %26, %27 : vector<32x128xf32>
    %cst_17 = arith.constant 0.000000e+00 : f32
    %29 = vector.broadcast %cst_17 : f32 to vector<32x128xf32>
    %30 = arith.maximumf %28, %29 : vector<32x128xf32>
    %31 = arith.truncf %30 : vector<32x128xf32> to vector<32x128xbf16>
    %c0_18 = arith.constant 0 : index
    %c128 = arith.constant 128 : index
    %32 = vector.load %arg12[%c0_18, %c128] : memref<32x384xbf16, #tpu.memory_space<vmem>>, vector<32x128xbf16>
    tpu.vector_store %arg12[%c0_18, %c128], %31 {strides = array<i32>} : memref<32x384xbf16, #tpu.memory_space<vmem>>, vector<32x128xbf16>,
    %cst_19 = arith.constant dense<0.000000e+00> : vector<32x128xf32>
    %33 = tpu.matmul %2, %31, %cst_19 {dimension_numbers = #tpu.dot_dimension_numbers<[1], [0], [0], [1], [0, 0, 1, 1], [], []>} : vector<32x32xbf16>, vector<32x128xbf16>, vector<32x128xf32> -> vector<32x128xf32>
    %34 = arith.truncf %33 : vector<32x128xf32> to vector<32x128xbf16>
    %c0_20 = arith.constant 0 : index
    %c0_21 = arith.constant 0 : index
    %35 = vector.load %arg12[%c0_20, %c0_21] : memref<32x384xbf16, #tpu.memory_space<vmem>>, vector<32x128xbf16>
    tpu.vector_store %arg12[%c0_20, %c0_21], %34 {strides = array<i32>} : memref<32x384xbf16, #tpu.memory_space<vmem>>, vector<32x128xbf16>,
    %cst_22 = arith.constant dense<0.000000e+00> : vector<32x128xf32>
    %36 = tpu.matmul %3, %31, %cst_22 {dimension_numbers = #tpu.dot_dimension_numbers<[1], [0], [0], [1], [0, 0, 1, 1], [], []>} : vector<32x32xbf16>, vector<32x128xbf16>, vector<32x128xf32> -> vector<32x128xf32>
    %37 = arith.truncf %36 : vector<32x128xf32> to vector<32x128xbf16>
    %c0_23 = arith.constant 0 : index
    %c256 = arith.constant 256 : index
    %38 = vector.load %arg12[%c0_23, %c256] : memref<32x384xbf16, #tpu.memory_space<vmem>>, vector<32x128xbf16>
    tpu.vector_store %arg12[%c0_23, %c256], %37 {strides = array<i32>} : memref<32x384xbf16, #tpu.memory_space<vmem>>, vector<32x128xbf16>,
    %c0_24 = arith.constant 0 : index
    %c0_25 = arith.constant 0 : index
    %39 = vector.load %arg12[%c0_24, %c0_25] : memref<32x384xbf16, #tpu.memory_space<vmem>>, vector<32x384xbf16>
    %c0_26 = arith.constant 0 : index
    %c0_27 = arith.constant 0 : index
    %40 = vector.load %arg6[%c0_26, %c0_27] : memref<384x128xbf16, #tpu.memory_space<vmem>>, vector<384x128xbf16>
    %cst_28 = arith.constant dense<0.000000e+00> : vector<32x128xf32>
    %41 = tpu.matmul %39, %40, %cst_28 {dimension_numbers = #tpu.dot_dimension_numbers<[1], [0], [0], [1], [0, 0, 1, 1], [], []>} : vector<32x384xbf16>, vector<384x128xbf16>, vector<32x128xf32> -> vector<32x128xf32>
    %c0_29 = arith.constant 0 : index
    %c0_30 = arith.constant 0 : index
    %42 = vector.load %arg4[%c0_29, %c0_30] : memref<1x128xf32, #tpu.memory_space<vmem>>, vector<1x128xf32>
    %c0_31 = arith.constant 0 : index
    %c0_32 = arith.constant 0 : index
    %43 = vector.load %arg5[%c0_31, %c0_32] : memref<1x128xf32, #tpu.memory_space<vmem>>, vector<1x128xf32>
    %cst_33 = arith.constant dense<0.000000e+00> : vector<32x128xf32>
    %44 = tpu.matmul %41, %1, %cst_33 {dimension_numbers = #tpu.dot_dimension_numbers<[1], [0], [0], [1], [0, 0, 1, 1], [], []>} : vector<32x128xf32>, vector<128x128xf32>, vector<32x128xf32> -> vector<32x128xf32>
    %cst_34 = arith.constant dense<0.000000e+00> : vector<128xf32>
    %45 = vector.multi_reduction <add>, %44, %cst_34 [0] : vector<32x128xf32> to vector<128xf32>
    %46 = vector.shape_cast %45 : vector<128xf32> to vector<1x128xf32>
    %cst_35 = arith.constant 5.120000e+02 : f32
    %47 = vector.broadcast %cst_35 : f32 to vector<1x128xf32>
    %48 = arith.divf %46, %47 : vector<1x128xf32>
    %49 = vector.broadcast %48 : vector<1x128xf32> to vector<32x128xf32>
    %50 = arith.subf %41, %49 : vector<32x128xf32>
    %51 = arith.mulf %50, %50 : vector<32x128xf32>
    %cst_36 = arith.constant dense<0.000000e+00> : vector<32x128xf32>
    %52 = tpu.matmul %51, %1, %cst_36 {dimension_numbers = #tpu.dot_dimension_numbers<[1], [0], [0], [1], [0, 0, 1, 1], [], []>} : vector<32x128xf32>, vector<128x128xf32>, vector<32x128xf32> -> vector<32x128xf32>
    %cst_37 = arith.constant dense<0.000000e+00> : vector<128xf32>
    %53 = vector.multi_reduction <add>, %52, %cst_37 [0] : vector<32x128xf32> to vector<128xf32>
    %54 = vector.shape_cast %53 : vector<128xf32> to vector<1x128xf32>
    %cst_38 = arith.constant 5.120000e+02 : f32
    %55 = vector.broadcast %cst_38 : f32 to vector<1x128xf32>
    %56 = arith.divf %54, %55 : vector<1x128xf32>
    %cst_39 = arith.constant 9.99999974E-6 : f32
    %57 = vector.broadcast %cst_39 : f32 to vector<1x128xf32>
    %58 = arith.addf %56, %57 : vector<1x128xf32>
    %59 = math.rsqrt %58 : vector<1x128xf32>
    %60 = arith.mulf %42, %59 : vector<1x128xf32>
    %61 = arith.mulf %48, %60 : vector<1x128xf32>
    %62 = arith.subf %43, %61 : vector<1x128xf32>
    %63 = vector.broadcast %60 : vector<1x128xf32> to vector<32x128xf32>
    %64 = arith.mulf %41, %63 : vector<32x128xf32>
    %65 = vector.broadcast %62 : vector<1x128xf32> to vector<32x128xf32>
    %66 = arith.addf %64, %65 : vector<32x128xf32>
    %cst_40 = arith.constant 0.000000e+00 : f32
    %67 = vector.broadcast %cst_40 : f32 to vector<32x128xf32>
    %68 = arith.maximumf %66, %67 : vector<32x128xf32>
    %69 = arith.truncf %68 : vector<32x128xf32> to vector<32x128xbf16>
    %c0_41 = arith.constant 0 : index
    %c128_42 = arith.constant 128 : index
    %70 = vector.load %arg12[%c0_41, %c128_42] : memref<32x384xbf16, #tpu.memory_space<vmem>>, vector<32x128xbf16>
    tpu.vector_store %arg12[%c0_41, %c128_42], %69 {strides = array<i32>} : memref<32x384xbf16, #tpu.memory_space<vmem>>, vector<32x128xbf16>,
    %cst_43 = arith.constant dense<0.000000e+00> : vector<32x128xf32>
    %71 = tpu.matmul %2, %69, %cst_43 {dimension_numbers = #tpu.dot_dimension_numbers<[1], [0], [0], [1], [0, 0, 1, 1], [], []>} : vector<32x32xbf16>, vector<32x128xbf16>, vector<32x128xf32> -> vector<32x128xf32>
    %72 = arith.truncf %71 : vector<32x128xf32> to vector<32x128xbf16>
    %c0_44 = arith.constant 0 : index
    %c0_45 = arith.constant 0 : index
    %73 = vector.load %arg12[%c0_44, %c0_45] : memref<32x384xbf16, #tpu.memory_space<vmem>>, vector<32x128xbf16>
    tpu.vector_store %arg12[%c0_44, %c0_45], %72 {strides = array<i32>} : memref<32x384xbf16, #tpu.memory_space<vmem>>, vector<32x128xbf16>,
    %cst_46 = arith.constant dense<0.000000e+00> : vector<32x128xf32>
    %74 = tpu.matmul %3, %69, %cst_46 {dimension_numbers = #tpu.dot_dimension_numbers<[1], [0], [0], [1], [0, 0, 1, 1], [], []>} : vector<32x32xbf16>, vector<32x128xbf16>, vector<32x128xf32> -> vector<32x128xf32>
    %75 = arith.truncf %74 : vector<32x128xf32> to vector<32x128xbf16>
    %c0_47 = arith.constant 0 : index
    %c256_48 = arith.constant 256 : index
    %76 = vector.load %arg12[%c0_47, %c256_48] : memref<32x384xbf16, #tpu.memory_space<vmem>>, vector<32x128xbf16>
    tpu.vector_store %arg12[%c0_47, %c256_48], %75 {strides = array<i32>} : memref<32x384xbf16, #tpu.memory_space<vmem>>, vector<32x128xbf16>,
    %c0_49 = arith.constant 0 : index
    %c0_50 = arith.constant 0 : index
    %77 = vector.load %arg12[%c0_49, %c0_50] : memref<32x384xbf16, #tpu.memory_space<vmem>>, vector<32x384xbf16>
    %c0_51 = arith.constant 0 : index
    %c0_52 = arith.constant 0 : index
    %78 = vector.load %arg7[%c0_51, %c0_52] : memref<384x128xbf16, #tpu.memory_space<vmem>>, vector<384x128xbf16>
    %cst_53 = arith.constant dense<0.000000e+00> : vector<32x128xf32>
    %79 = tpu.matmul %77, %78, %cst_53 {dimension_numbers = #tpu.dot_dimension_numbers<[1], [0], [0], [1], [0, 0, 1, 1], [], []>} : vector<32x384xbf16>, vector<384x128xbf16>, vector<32x128xf32> -> vector<32x128xf32>
    %80 = arith.addf %79, %0 : vector<32x128xf32>
    %c0_54 = arith.constant 0 : index
    %c0_55 = arith.constant 0 : index
    %81 = vector.load %arg11[%c0_54, %c0_55] : memref<32x128xf32, #tpu.memory_space<vmem>>, vector<32x128xf32>
    tpu.vector_store %arg11[%c0_54, %c0_55], %80 {strides = array<i32>} : memref<32x128xf32, #tpu.memory_space<vmem>>, vector<32x128xf32>,
    return
  }
  func.func @transform_0(%arg0: i32) -> (i32, i32) {
    %c0_i32 = arith.constant 0 : i32
    %c0_i32_0 = arith.constant 0 : i32
    %c0_i32_1 = arith.constant 0 : i32
    return %c0_i32, %c0_i32_0 : i32, i32
  }
  func.func @transform_1(%arg0: i32) -> (i32, i32) {
    %c0_i32 = arith.constant 0 : i32
    %c0_i32_0 = arith.constant 0 : i32
    %c0_i32_1 = arith.constant 0 : i32
    return %c0_i32, %c0_i32_0 : i32, i32
  }
  func.func @transform_2(%arg0: i32) -> (i32, i32) {
    %c0_i32 = arith.constant 0 : i32
    %c0_i32_0 = arith.constant 0 : i32
    %c0_i32_1 = arith.constant 0 : i32
    return %c0_i32, %c0_i32_0 : i32, i32
  }
  func.func @transform_3(%arg0: i32) -> (i32, i32) {
    %c0_i32 = arith.constant 0 : i32
    %c0_i32_0 = arith.constant 0 : i32
    %c0_i32_1 = arith.constant 0 : i32
    return %c0_i32, %c0_i32_0 : i32, i32
  }
  func.func @transform_4(%arg0: i32) -> (i32, i32) {
    %c0_i32 = arith.constant 0 : i32
    %c0_i32_0 = arith.constant 0 : i32
    %c0_i32_1 = arith.constant 0 : i32
    return %c0_i32, %c0_i32_0 : i32, i32
  }
  func.func @transform_5(%arg0: i32) -> (i32, i32) {
    %c0_i32 = arith.constant 0 : i32
    %c0_i32_0 = arith.constant 0 : i32
    %c0_i32_1 = arith.constant 0 : i32
    return %c0_i32, %c0_i32_0 : i32, i32
  }
  func.func @transform_6(%arg0: i32) -> (i32, i32) {
    %c0_i32 = arith.constant 0 : i32
    %c0_i32_0 = arith.constant 0 : i32
    %c0_i32_1 = arith.constant 0 : i32
    return %c0_i32, %c0_i32_0 : i32, i32
  }
  func.func @transform_7(%arg0: i32) -> (i32, i32) {
    %c0_i32 = arith.constant 0 : i32
    %c0_i32_0 = arith.constant 0 : i32
    %c0_i32_1 = arith.constant 0 : i32
    return %c0_i32, %c0_i32_0 : i32, i32
  }
  func.func @transform_8(%arg0: i32) -> (i32, i32) {
    %c0_i32 = arith.constant 0 : i32
    %c0_i32_0 = arith.constant 0 : i32
    %c0_i32_1 = arith.constant 0 : i32
    return %c0_i32, %c0_i32_0 : i32, i32
  }
  func.func @transform_9(%arg0: i32) -> (i32, i32) {
    %c0_i32 = arith.constant 0 : i32
    %c0_i32_0 = arith.constant 0 : i32
    %c0_i32_1 = arith.constant 0 : i32
    return %c0_i32, %c0_i32_0 : i32, i32
  }
  func.func @transform_10(%arg0: i32) -> (i32, i32) {
    %c0_i32 = arith.constant 0 : i32
    %c0_i32_0 = arith.constant 0 : i32
    %c0_i32_1 = arith.constant 0 : i32
    return %c0_i32, %c0_i32_0 : i32, i32
  }
}

</mosaic_0001>

<llo_original>
// kernel: tile.23
$region0: #{tile.23}
  #allocation0 [shape = 's32[1]{0}', space=sflag, size = 0x4, scoped, tag = 'scoped memory for tile.23']
  %s0 = inlined_call_operand.vmem [shape: f32[8], index: 0, kind: input, shape index: {}]
  %s1 = inlined_call_operand.vmem [shape: f32[16,8], index: 1, kind: output, shape index: {}]
  // Predicated region
  $region2: #{tile.23} parent=0 // pred_check
    _
  $region3: #{tile.23} parent=0 // pred_check_branch
    %3 = sbr.rel (0) target = $region5
  $region4: #{tile.23} parent=0 // pred_region
    _
  $region5: #{tile.23} parent=0 // pred_fallthru
    _
  %v4 = vld [vmem:[%s0] ss:$0 sm:$0xff]
  %5 = vst [vmem:[%s1] sm:$0xff] %v4
  %s6 = scalar_lea.vmem %s1, 8
  %7 = vst [vmem:[%s6] sm:$0xff] %v4

// kernel: tile.24
$region0: #{tile.24}
  %s0 = inlined_call_operand.vmem [shape: f32[16,8], index: 0, kind: input, shape index: {}]
  %s1 = inlined_call_operand.vmem [shape: f32[1,128], index: 1, kind: output, shape index: {}]
  $region1: #{tile.24} parent=0
    #allocation0 [shape = 'u8[4096]{0}', space=vmem, size = 0x1000, scoped, tag = 'scoped mem for output reshape']
    %v2 = vld [vmem:[%s0] sm:$0x1]
    %vm3 = vcmask 64512
    %4 = vst.msk [vmem:[#allocation0] sm:$0x1] %vm3, %v2
    %s5 = scalar_lea.vmem %s0, 15
    %v6 = vld [vmem:[%s5] sm:$0x1]
    %7 = vrot.lane.b32.xlu0 %v6, 120
    %v8 = vpop.permute.xlu0 %7
    %vm9 = vcmask 1048512
    %10 = vst.msk [vmem:[#allocation0] sm:$0x1] %vm9, %v8
    %s11 = scalar_lea.vmem %s0, 14
    %v12 = vld [vmem:[%s11] sm:$0x1]
    %13 = vrot.lane.b32.xlu0 %v12, 112
    %v14 = vpop.permute.xlu0 %13
    %vm15 = vcmask 982912
    %16 = vst.msk [vmem:[#allocation0] sm:$0x1] %vm15, %v14
    %s17 = scalar_lea.vmem %s0, 13
    %v18 = vld [vmem:[%s17] sm:$0x1]
    %19 = vrot.lane.b32.xlu0 %v18, 104
    %v20 = vpop.permute.xlu0 %19
    %vm21 = vcmask 917312
    %22 = vst.msk [vmem:[#allocation0] sm:$0x1] %vm21, %v20
    %s23 = scalar_lea.vmem %s0, 12
    %v24 = vld [vmem:[%s23] sm:$0x1]
    %25 = vrot.lane.b32.xlu0 %v24, 96
    %v26 = vpop.permute.xlu0 %25
    %vm27 = vcmask 851712
    %28 = vst.msk [vmem:[#allocation0] sm:$0x1] %vm27, %v26
    %s29 = scalar_lea.vmem %s0, 11
    %v30 = vld [vmem:[%s29] sm:$0x1]
    %31 = vrot.lane.b32.xlu0 %v30, 88
    %v32 = vpop.permute.xlu0 %31
    %vm33 = vcmask 786112
    %34 = vst.msk [vmem:[#allocation0] sm:$0x1] %vm33, %v32
    %s35 = scalar_lea.vmem %s0, 10
    %v36 = vld [vmem:[%s35] sm:$0x1]
    %37 = vrot.lane.b32.xlu0 %v36, 80
    %v38 = vpop.permute.xlu0 %37
    %vm39 = vcmask 720512
    %40 = vst.msk [vmem:[#allocation0] sm:$0x1] %vm39, %v38
    %s41 = scalar_lea.vmem %s0, 9
    %v42 = vld [vmem:[%s41] sm:$0x1]
    %43 = vrot.lane.b32.xlu0 %v42, 72
    %v44 = vpop.permute.xlu0 %43
    %vm45 = vcmask 654912
    %46 = vst.msk [vmem:[#allocation0] sm:$0x1] %vm45, %v44
    %s47 = scalar_lea.vmem %s0, 8
    %v48 = vld [vmem:[%s47] sm:$0x1]
    %49 = vrot.lane.b32.xlu0 %v48, 64
    %v50 = vpop.permute.xlu0 %49
    %vm51 = vcmask 589312
    %52 = vst.msk [vmem:[#allocation0] sm:$0x1] %vm51, %v50
    %s53 = scalar_lea.vmem %s0, 7
    %v54 = vld [vmem:[%s53] sm:$0x1]
    %55 = vrot.lane.b32.xlu0 %v54, 56
    %v56 = vpop.permute.xlu0 %55
    %vm57 = vcmask 523712
    %58 = vst.msk [vmem:[#allocation0] sm:$0x1] %vm57, %v56
    %s59 = scalar_lea.vmem %s0, 6
    %v60 = vld [vmem:[%s59] sm:$0x1]
    %61 = vrot.lane.b32.xlu0 %v60, 48
    %v62 = vpop.permute.xlu0 %61
    %vm63 = vcmask 458112
    %64 = vst.msk [vmem:[#allocation0] sm:$0x1] %vm63, %v62
    %s65 = scalar_lea.vmem %s0, 5
    %v66 = vld [vmem:[%s65] sm:$0x1]
    %67 = vrot.lane.b32.xlu0 %v66, 40
    %v68 = vpop.permute.xlu0 %67
    %vm69 = vcmask 392512
    %70 = vst.msk [vmem:[#allocation0] sm:$0x1] %vm69, %v68
    %s71 = scalar_lea.vmem %s0, 4
    %v72 = vld [vmem:[%s71] sm:$0x1]
    %73 = vrot.lane.b32.xlu0 %v72, 32
    %v74 = vpop.permute.xlu0 %73
    %vm75 = vcmask 326912
    %76 = vst.msk [vmem:[#allocation0] sm:$0x1] %vm75, %v74
    %s77 = scalar_lea.vmem %s0, 3
    %v78 = vld [vmem:[%s77] sm:$0x1]
    %79 = vrot.lane.b32.xlu0 %v78, 24
    %v80 = vpop.permute.xlu0 %79
    %vm81 = vcmask 261312
    %82 = vst.msk [vmem:[#allocation0] sm:$0x1] %vm81, %v80
    %s83 = scalar_lea.vmem %s0, 2
    %v84 = vld [vmem:[%s83] sm:$0x1]
    %85 = vrot.lane.b32.xlu0 %v84, 16
    %v86 = vpop.permute.xlu0 %85
    %vm87 = vcmask 195712
    %88 = vst.msk [vmem:[#allocation0] sm:$0x1] %vm87, %v86
    %s89 = scalar_lea.vmem %s0, 1
    %v90 = vld [vmem:[%s89] sm:$0x1]
    %91 = vrot.lane.b32.xlu0 %v90, 8
    %v92 = vpop.permute.xlu0 %91
    %vm93 = vcmask 130112
    %94 = vst.msk [vmem:[#allocation0] sm:$0x1] %vm93, %v92
    %s96 = sshllo.u32 0, 1
    %v98 = vld [vmem:[#allocation0] sm:%s96]
    %s99 = sshllo.u32 0, 1
    %100 = vst [vmem:[%s1] sm:%s99] %v98

// kernel: resblock_forward.1
$region0: #{resblock_forward.1}
  #allocation0 [shape = 'u32[]', space=smem, size = 0x4, offset = 0x4, fixed_abs, tag = 'smem constant byte address 0x4 - core index']
  #allocation1 [shape = 'u32[144,128]{1,0:T(1,128)}', space=vmem, size = 0x12000, scoped, tag = 'internal scratch']
  #allocation2 [shape = 'bf16[32,384]{1,0:T(16,128)(2,1)}', space=vmem, size = 0x6000, scoped, tag = 'scratch operand']
  %s0 = inlined_call_operand.vmem [shape: f32[32,128], index: 0, kind: input, shape index: {}]
  %s1 = inlined_call_operand.vmem [shape: f32[1,128], index: 1, kind: input, shape index: {}]
  %s2 = inlined_call_operand.vmem [shape: f32[1,128], index: 2, kind: input, shape index: {}]
  %s3 = inlined_call_operand.vmem [shape: f32[1,128], index: 3, kind: input, shape index: {}]
  %s4 = inlined_call_operand.vmem [shape: f32[1,128], index: 4, kind: input, shape index: {}]
  %s5 = inlined_call_operand.vmem [shape: bf16[384,128], index: 5, kind: input, shape index: {}]
  %s6 = inlined_call_operand.vmem [shape: bf16[384,128], index: 6, kind: input, shape index: {}]
  %s7 = inlined_call_operand.vmem [shape: bf16[32,32], index: 7, kind: input, shape index: {}]
  %s8 = inlined_call_operand.vmem [shape: bf16[32,32], index: 8, kind: input, shape index: {}]
  %s9 = inlined_call_operand.vmem [shape: f32[128,128], index: 9, kind: input, shape index: {}]
  %s10 = inlined_call_operand.vmem [shape: f32[32,128], index: 10, kind: output, shape index: {}]
  %s11 = sld [smem:[#allocation0]]
  $region50: #{resblock_forward.1} parent=0
    _
  %s13 = ssub.s32 1, %s11
  %s14 = scalar_select 0, %s13, %s11
  // Predicated region
  $region2: #{resblock_forward.1} parent=0 // pred_check
    _
  $region3: #{resblock_forward.1} parent=0 // pred_check_branch
    %16 = sbr.rel (0) target = $region5
  $region4: #{resblock_forward.1} parent=0 // pred_region
    _
  $region5: #{resblock_forward.1} parent=0 // pred_fallthru
    _
  // Predicated region
  $region6: #{resblock_forward.1} parent=0 // pred_check
    _
  $region7: #{resblock_forward.1} parent=0 // pred_check_branch
    %18 = sbr.rel (0) target = $region9
  $region8: #{resblock_forward.1} parent=0 // pred_region
    _
  $region9: #{resblock_forward.1} parent=0 // pred_fallthru
    _
  // Predicated region
  $region10: #{resblock_forward.1} parent=0 // pred_check
    _
  $region11: #{resblock_forward.1} parent=0 // pred_check_branch
    %20 = sbr.rel (0) target = $region13
  $region12: #{resblock_forward.1} parent=0 // pred_region
    _
  $region13: #{resblock_forward.1} parent=0 // pred_fallthru
    _
  // Predicated region
  $region14: #{resblock_forward.1} parent=0 // pred_check
    _
  $region15: #{resblock_forward.1} parent=0 // pred_check_branch
    %22 = sbr.rel (0) target = $region17
  $region16: #{resblock_forward.1} parent=0 // pred_region
    _
  $region17: #{resblock_forward.1} parent=0 // pred_fallthru
    _
  // Predicated region
  $region18: #{resblock_forward.1} parent=0 // pred_check
    _
  $region19: #{resblock_forward.1} parent=0 // pred_check_branch
    %24 = sbr.rel (0) target = $region21
  $region20: #{resblock_forward.1} parent=0 // pred_region
    _
  $region21: #{resblock_forward.1} parent=0 // pred_fallthru
    _
  // Predicated region
  $region22: #{resblock_forward.1} parent=0 // pred_check
    _
  $region23: #{resblock_forward.1} parent=0 // pred_check_branch
    %26 = sbr.rel (0) target = $region25
  $region24: #{resblock_forward.1} parent=0 // pred_region
    _
  $region25: #{resblock_forward.1} parent=0 // pred_fallthru
    _
  // Predicated region
  $region26: #{resblock_forward.1} parent=0 // pred_check
    _
  $region27: #{resblock_forward.1} parent=0 // pred_check_branch
    %28 = sbr.rel (0) target = $region29
  $region28: #{resblock_forward.1} parent=0 // pred_region
    _
  $region29: #{resblock_forward.1} parent=0 // pred_fallthru
    _
  // Predicated region
  $region30: #{resblock_forward.1} parent=0 // pred_check
    _
  $region31: #{resblock_forward.1} parent=0 // pred_check_branch
    %30 = sbr.rel (0) target = $region33
  $region32: #{resblock_forward.1} parent=0 // pred_region
    _
  $region33: #{resblock_forward.1} parent=0 // pred_fallthru
    _
  // Predicated region
  $region34: #{resblock_forward.1} parent=0 // pred_check
    _
  $region35: #{resblock_forward.1} parent=0 // pred_check_branch
    %32 = sbr.rel (0) target = $region37
  $region36: #{resblock_forward.1} parent=0 // pred_region
    _
  $region37: #{resblock_forward.1} parent=0 // pred_fallthru
    _
  // Predicated region
  $region38: #{resblock_forward.1} parent=0 // pred_check
    _
  $region39: #{resblock_forward.1} parent=0 // pred_check_branch
    %34 = sbr.rel (0) target = $region41
  $region40: #{resblock_forward.1} parent=0 // pred_region
    _
  $region41: #{resblock_forward.1} parent=0 // pred_fallthru
    _
  %v36 = vld [vmem:[%s0] sm:$0xff]
  %v37 = vld [vmem:[%s0 + $0x8] sm:$0xff]
  %v38 = vld [vmem:[%s0 + $0x10] sm:$0xff]
  %v39 = vld [vmem:[%s0 + $0x18] sm:$0xff]
  %v40 = vld [vmem:[%s9] sm:$0xff]
  %v41 = vld [vmem:[%s9 + $0x8] sm:$0xff]
  %v42 = vld [vmem:[%s9 + $0x10] sm:$0xff]
  %v43 = vld [vmem:[%s9 + $0x18] sm:$0xff]
  %v44 = vld [vmem:[%s9 + $0x20] sm:$0xff]
  %v45 = vld [vmem:[%s9 + $0x28] sm:$0xff]
  %v46 = vld [vmem:[%s9 + $0x30] sm:$0xff]
  %v47 = vld [vmem:[%s9 + $0x38] sm:$0xff]
  %v48 = vld [vmem:[%s9 + $0x40] sm:$0xff]
  %v49 = vld [vmem:[%s9 + $0x48] sm:$0xff]
  %v50 = vld [vmem:[%s9 + $0x50] sm:$0xff]
  %v51 = vld [vmem:[%s9 + $0x58] sm:$0xff]
  %v52 = vld [vmem:[%s9 + $0x60] sm:$0xff]
  %v53 = vld [vmem:[%s9 + $0x68] sm:$0xff]
  %v54 = vld [vmem:[%s9 + $0x70] sm:$0xff]
  %v55 = vld [vmem:[%s9 + $0x78] sm:$0xff]
  %v56 = vld [vmem:[%s7] sm:$0xf]
  %v57 = vld [vmem:[%s7 + $0x4] sm:$0xf]
  %v58 = vld [vmem:[%s7 + $0x8] sm:$0xf]
  %v59 = vld [vmem:[%s7 + $0xc] sm:$0xf]
  %v60 = vld [vmem:[%s8] sm:$0xf]
  %v61 = vld [vmem:[%s8 + $0x4] sm:$0xf]
  %v62 = vld [vmem:[%s8 + $0x8] sm:$0xf]
  %v63 = vld [vmem:[%s8 + $0xc] sm:$0xf]
  %v64 = vld [vmem:[%s1] sm:$0x1]
  %v65 = vld [vmem:[%s2] sm:$0x1]
  %66 = vmatprep.subr.mxu0 0.0
  %67 = vmatpush1.msra.mxu0 %v40
  %68 = vmatprep.subr.mxu0 0.0
  %69 = vmatpush1.msra.mxu0 %v41
  %70 = vmatprep.subr.mxu0 0.0
  %71 = vmatpush1.msra.mxu0 %v42
  %72 = vmatprep.subr.mxu0 0.0
  %73 = vmatpush1.msra.mxu0 %v43
  %74 = vmatprep.subr.mxu0 0.0
  %75 = vmatpush1.msra.mxu0 %v44
  %76 = vmatprep.subr.mxu0 0.0
  %77 = vmatpush1.msra.mxu0 %v45
  %78 = vmatprep.subr.mxu0 0.0
  %79 = vmatpush1.msra.mxu0 %v46
  %80 = vmatprep.subr.mxu0 0.0
  %81 = vmatpush1.msra.mxu0 %v47
  %82 = vmatprep.subr.mxu0 0.0
  %83 = vmatpush1.msra.mxu0 %v48
  %84 = vmatprep.subr.mxu0 0.0
  %85 = vmatpush1.msra.mxu0 %v49
  %86 = vmatprep.subr.mxu0 0.0
  %87 = vmatpush1.msra.mxu0 %v50
  %88 = vmatprep.subr.mxu0 0.0
  %89 = vmatpush1.msra.mxu0 %v51
  %90 = vmatprep.subr.mxu0 0.0
  %91 = vmatpush1.msra.mxu0 %v52
  %92 = vmatprep.subr.mxu0 0.0
  %93 = vmatpush1.msra.mxu0 %v53
  %94 = vmatprep.subr.mxu0 0.0
  %95 = vmatpush1.msra.mxu0 %v54
  %96 = vmatprep.subr.mxu0 0.0
  %97 = vmatpush1.msra.mxu0 %v55
  %98 = vmatprep.subr.mxu0 0.0
  %99 = vmatpush1.msra.mxu0 0.0
  %100 = vmatprep.subr.mxu0 0.0
  %101 = vmatpush1.msra.mxu0 0.0
  %102 = vmatprep.subr.mxu0 0.0
  %103 = vmatpush1.msra.mxu0 0.0
  %104 = vmatprep.subr.mxu0 0.0
  %105 = vmatpush1.msra.mxu0 0.0
  %106 = vmatprep.subr.mxu0 0.0
  %107 = vmatpush1.msra.mxu0 0.0
  %108 = vmatprep.subr.mxu0 0.0
  %109 = vmatpush1.msra.mxu0 0.0
  %110 = vmatprep.subr.mxu0 0.0
  %111 = vmatpush1.msra.mxu0 0.0
  %112 = vmatprep.subr.mxu0 0.0
  %113 = vmatpush1.msra.mxu0 0.0
  %114 = vmatprep.subr.mxu0 0.0
  %115 = vmatpush1.msra.mxu0 0.0
  %116 = vmatprep.subr.mxu0 0.0
  %117 = vmatpush1.msra.mxu0 0.0
  %118 = vmatprep.subr.mxu0 0.0
  %119 = vmatpush1.msra.mxu0 0.0
  %120 = vmatprep.subr.mxu0 0.0
  %121 = vmatpush1.msra.mxu0 0.0
  %122 = vmatprep.subr.mxu0 0.0
  %123 = vmatpush1.msra.mxu0 0.0
  %124 = vmatprep.subr.mxu0 0.0
  %125 = vmatpush1.msra.mxu0 0.0
  %126 = vmatprep.subr.mxu0 0.0
  %127 = vmatpush1.msra.mxu0 0.0
  %128 = vmatprep.subr.mxu0 0.0
  %129 = vmatpush1.msra.mxu0 0.0
  %130 = vmatprep.mubr.f32.mxu0 0.0
  %131 = vmatmul.mubr.f32.gmra.mrb[0].mxu0 %v36
  %v132 = vpop.f32.mrb[0].mxu0
  %v133 = vadd.f32 0.0, %v132
  %v134 = vpop.f32.mrb[0].mxu0
  %135 = vmatprep.mubr.f32.mxu0 0.0
  %136 = vmatmul.mubr.f32.gmra.mrb[0].mxu0 %v37
  %v137 = vpop.f32.mrb[0].mxu0
  %v138 = vadd.f32 0.0, %v137
  %v139 = vpop.f32.mrb[0].mxu0
  %140 = vmatprep.mubr.f32.mxu0 0.0
  %141 = vmatmul.mubr.f32.gmra.mrb[0].mxu0 %v38
  %v142 = vpop.f32.mrb[0].mxu0
  %v143 = vadd.f32 0.0, %v142
  %v144 = vpop.f32.mrb[0].mxu0
  %145 = vmatprep.mubr.f32.mxu0 0.0
  %146 = vmatmul.mubr.f32.gmra.mrb[0].mxu0 %v39
  %v147 = vpop.f32.mrb[0].mxu0
  %v148 = vadd.f32 0.0, %v147
  %v149 = vpop.f32.mrb[0].mxu0
  %150 = vdwg.mxu0
  %v151 = vadd.f32 %v133, %v138
  %v152 = vadd.f32 %v151, %v143
  %v153 = vadd.f32 %v152, %v148
  %v154 = vrot.slane %v153, 4
  %v155 = vadd.f32 %v153, %v154
  %v156 = vrot.slane %v155, 2
  %v157 = vadd.f32 %v155, %v156
  %v158 = vrot.slane %v157, 1
  %v159 = vadd.f32 %v157, %v158
  %v160 = vrcp.pop 512.0
  %v161 = vmul.f32 %v159, %v160
  %v162 = vsub.f32 %v36, %v161
  %v163 = vsub.f32 %v37, %v161
  %v164 = vsub.f32 %v38, %v161
  %v165 = vsub.f32 %v39, %v161
  %v166 = vmul.f32 %v162, %v162
  %v167 = vmul.f32 %v163, %v163
  %v168 = vmul.f32 %v164, %v164
  %v169 = vmul.f32 %v165, %v165
  %170 = vmatprep.subr.mxu0 0.0
  %171 = vmatpush1.msra.mxu0 %v40
  %172 = vmatprep.subr.mxu0 0.0
  %173 = vmatpush1.msra.mxu0 %v41
  %174 = vmatprep.subr.mxu0 0.0
  %175 = vmatpush1.msra.mxu0 %v42
  %176 = vmatprep.subr.mxu0 0.0
  %177 = vmatpush1.msra.mxu0 %v43
  %178 = vmatprep.subr.mxu0 0.0
  %179 = vmatpush1.msra.mxu0 %v44
  %180 = vmatprep.subr.mxu0 0.0
  %181 = vmatpush1.msra.mxu0 %v45
  %182 = vmatprep.subr.mxu0 0.0
  %183 = vmatpush1.msra.mxu0 %v46
  %184 = vmatprep.subr.mxu0 0.0
  %185 = vmatpush1.msra.mxu0 %v47
  %186 = vmatprep.subr.mxu0 0.0
  %187 = vmatpush1.msra.mxu0 %v48
  %188 = vmatprep.subr.mxu0 0.0
  %189 = vmatpush1.msra.mxu0 %v49
  %190 = vmatprep.subr.mxu0 0.0
  %191 = vmatpush1.msra.mxu0 %v50
  %192 = vmatprep.subr.mxu0 0.0
  %193 = vmatpush1.msra.mxu0 %v51
  %194 = vmatprep.subr.mxu0 0.0
  %195 = vmatpush1.msra.mxu0 %v52
  %196 = vmatprep.subr.mxu0 0.0
  %197 = vmatpush1.msra.mxu0 %v53
  %198 = vmatprep.subr.mxu0 0.0
  %199 = vmatpush1.msra.mxu0 %v54
  %200 = vmatprep.subr.mxu0 0.0
  %201 = vmatpush1.msra.mxu0 %v55
  %202 = vmatprep.subr.mxu0 0.0
  %203 = vmatpush1.msra.mxu0 0.0
  %204 = vmatprep.subr.mxu0 0.0
  %205 = vmatpush1.msra.mxu0 0.0
  %206 = vmatprep.subr.mxu0 0.0
  %207 = vmatpush1.msra.mxu0 0.0
  %208 = vmatprep.subr.mxu0 0.0
  %209 = vmatpush1.msra.mxu0 0.0
  %210 = vmatprep.subr.mxu0 0.0
  %211 = vmatpush1.msra.mxu0 0.0
  %212 = vmatprep.subr.mxu0 0.0
  %213 = vmatpush1.msra.mxu0 0.0
  %214 = vmatprep.subr.mxu0 0.0
  %215 = vmatpush1.msra.mxu0 0.0
  %216 = vmatprep.subr.mxu0 0.0
  %217 = vmatpush1.msra.mxu0 0.0
  %218 = vmatprep.subr.mxu0 0.0
  %219 = vmatpush1.msra.mxu0 0.0
  %220 = vmatprep.subr.mxu0 0.0
  %221 = vmatpush1.msra.mxu0 0.0
  %222 = vmatprep.subr.mxu0 0.0
  %223 = vmatpush1.msra.mxu0 0.0
  %224 = vmatprep.subr.mxu0 0.0
  %225 = vmatpush1.msra.mxu0 0.0
  %226 = vmatprep.subr.mxu0 0.0
  %227 = vmatpush1.msra.mxu0 0.0
  %228 = vmatprep.subr.mxu0 0.0
  %229 = vmatpush1.msra.mxu0 0.0
  %230 = vmatprep.subr.mxu0 0.0
  %231 = vmatpush1.msra.mxu0 0.0
  %232 = vmatprep.subr.mxu0 0.0
  %233 = vmatpush1.msra.mxu0 0.0
  %234 = vmatprep.mubr.f32.mxu0 0.0
  %235 = vmatmul.mubr.f32.gmra.mrb[0].mxu0 %v166
  %v236 = vpop.f32.mrb[0].mxu0
  %v237 = vadd.f32 0.0, %v236
  %v238 = vpop.f32.mrb[0].mxu0
  %239 = vmatprep.mubr.f32.mxu0 0.0
  %240 = vmatmul.mubr.f32.gmra.mrb[0].mxu0 %v167
  %v241 = vpop.f32.mrb[0].mxu0
  %v242 = vadd.f32 0.0, %v241
  %v243 = vpop.f32.mrb[0].mxu0
  %244 = vmatprep.mubr.f32.mxu0 0.0
  %245 = vmatmul.mubr.f32.gmra.mrb[0].mxu0 %v168
  %v246 = vpop.f32.mrb[0].mxu0
  %v247 = vadd.f32 0.0, %v246
  %v248 = vpop.f32.mrb[0].mxu0
  %249 = vmatprep.mubr.f32.mxu0 0.0
  %250 = vmatmul.mubr.f32.gmra.mrb[0].mxu0 %v169
  %v251 = vpop.f32.mrb[0].mxu0
  %v252 = vadd.f32 0.0, %v251
  %v253 = vpop.f32.mrb[0].mxu0
  %254 = vdwg.mxu0
  %v255 = vadd.f32 %v237, %v242
  %v256 = vadd.f32 %v255, %v247
  %v257 = vadd.f32 %v256, %v252
  %v258 = vrot.slane %v257, 4
  %v259 = vadd.f32 %v257, %v258
  %v260 = vrot.slane %v259, 2
  %v261 = vadd.f32 %v259, %v260
  %v262 = vrot.slane %v261, 1
  %v263 = vadd.f32 %v261, %v262
  %v264 = vmul.f32 %v263, %v160
  %v265 = vadd.f32 %v264, 1e-05
  %v266 = vrsqrt.pop %v265
  %v267 = vmul.f32 %v64, %v266
  %v268 = vmul.f32 %v161, %v267
  %v269 = vsub.f32 %v65, %v268
  %v271 = vlaneseq
  %v272 = vshrl.u32 %v271, 7
  %v273 = vsub.s32 0, %v272
  %v274 = vrot.slane %v267, %v273
  %v276 = vmul.f32 %v36, %v274
  %v277 = vmul.f32 %v37, %v274
  %v278 = vmul.f32 %v38, %v274
  %v279 = vmul.f32 %v39, %v274
  %v281 = vlaneseq
  %v282 = vshrl.u32 %v281, 7
  %v283 = vsub.s32 0, %v282
  %v284 = vrot.slane %v269, %v283
  %v286 = vadd.f32 %v276, %v284
  %v287 = vadd.f32 %v277, %v284
  %v288 = vadd.f32 %v278, %v284
  %v289 = vadd.f32 %v279, %v284
  %v290 = vmax.f32 %v286, 0.0
  %v291 = vmax.f32 %v287, 0.0
  %v292 = vmax.f32 %v288, 0.0
  %v293 = vmax.f32 %v289, 0.0
  %v294 = vpack.c.bf16 %v291, %v290
  %v295 = vpack.c.bf16 %v293, %v292
  %296 = vst [vmem:[#allocation2 + $0x8] sm:$0xff] %v294
  %297 = vst [vmem:[#allocation2 + $0x20] sm:$0xff] %v295
  %v302 = vunpack.c.l.b16 %v56
  %v303 = vunpack.c.l.b16 %v57
  %v304 = vunpack.c.l.b16 %v58
  %v305 = vunpack.c.l.b16 %v59
  %v306 = vpack.c.b16 %v303, %v302
  %v307 = vpack.c.b16 %v305, %v304
  %vm308 = vcmask 261120
  %v310 = vsel %vm308, %v306, 0
  %v313 = vsel %vm308, %v307, 0
  %315 = vmatprep.subr.bf16.mxu0 0
  %316 = vmatpush1.bf16.msra.mxu0 %v294
  %317 = vmatprep.subr.bf16.mxu0 0
  %318 = vmatpush1.bf16.msra.mxu0 %v295
  %319 = vmatprep.subr.bf16.mxu0 0
  %320 = vmatpush1.bf16.msra.mxu0 0
  %321 = vmatprep.subr.bf16.mxu0 0
  %322 = vmatpush1.bf16.msra.mxu0 0
  %323 = vmatprep.subr.bf16.mxu0 0
  %324 = vmatpush1.bf16.msra.mxu0 0
  %325 = vmatprep.subr.bf16.mxu0 0
  %326 = vmatpush1.bf16.msra.mxu0 0
  %327 = vmatprep.subr.bf16.mxu0 0
  %328 = vmatpush1.bf16.msra.mxu0 0
  %329 = vmatprep.subr.bf16.mxu0 0
  %330 = vmatpush1.bf16.msra.mxu0 0
  %331 = vmatprep.subr.bf16.mxu0 0
  %332 = vmatpush1.bf16.msra.mxu0 0
  %333 = vmatprep.subr.bf16.mxu0 0
  %334 = vmatpush1.bf16.msra.mxu0 0
  %335 = vmatprep.subr.bf16.mxu0 0
  %336 = vmatpush1.bf16.msra.mxu0 0
  %337 = vmatprep.subr.bf16.mxu0 0
  %338 = vmatpush1.bf16.msra.mxu0 0
  %339 = vmatprep.subr.bf16.mxu0 0
  %340 = vmatpush1.bf16.msra.mxu0 0
  %341 = vmatprep.subr.bf16.mxu0 0
  %342 = vmatpush1.bf16.msra.mxu0 0
  %343 = vmatprep.subr.bf16.mxu0 0
  %344 = vmatpush1.bf16.msra.mxu0 0
  %345 = vmatprep.subr.bf16.mxu0 0
  %346 = vmatpush1.bf16.msra.mxu0 0
  %347 = vmatprep.mubr.bf16.mxu0 0
  %348 = vmatmul.mubr.bf16.gmra.mrb[0].mxu0 %v310
  %v349 = vpop.f32.mrb[0].mxu0
  %v350 = vadd.f32 0.0, %v349
  %v351 = vpop.f32.mrb[0].mxu0
  %v352 = vpop.f32.mrb[0].mxu0
  %v353 = vadd.f32 0.0, %v352
  %v354 = vpop.f32.mrb[0].mxu0
  %355 = vmatprep.mubr.bf16.mxu0 0
  %356 = vmatmul.mubr.bf16.gmra.mrb[0].mxu0 %v313
  %v357 = vpop.f32.mrb[0].mxu0
  %v358 = vadd.f32 0.0, %v357
  %v359 = vpop.f32.mrb[0].mxu0
  %v360 = vpop.f32.mrb[0].mxu0
  %v361 = vadd.f32 0.0, %v360
  %v362 = vpop.f32.mrb[0].mxu0
  %363 = vdwg.mxu0
  %v364 = vpack.c.bf16 %v353, %v350
  %v365 = vpack.c.bf16 %v361, %v358
  %366 = vst [vmem:[#allocation2] sm:$0xff] %v364
  %367 = vst [vmem:[#allocation2 + $0x18] sm:$0xff] %v365
  %v372 = vunpack.c.l.b16 %v60
  %v373 = vunpack.c.l.b16 %v61
  %v374 = vunpack.c.l.b16 %v62
  %v375 = vunpack.c.l.b16 %v63
  %v376 = vpack.c.b16 %v373, %v372
  %v377 = vpack.c.b16 %v375, %v374
  %v379 = vsel %vm308, %v376, 0
  %v382 = vsel %vm308, %v377, 0
  %384 = vmatprep.subr.bf16.mxu0 0
  %385 = vmatpush1.bf16.msra.mxu0 %v294
  %386 = vmatprep.subr.bf16.mxu0 0
  %387 = vmatpush1.bf16.msra.mxu0 %v295
  %388 = vmatprep.subr.bf16.mxu0 0
  %389 = vmatpush1.bf16.msra.mxu0 0
  %390 = vmatprep.subr.bf16.mxu0 0
  %391 = vmatpush1.bf16.msra.mxu0 0
  %392 = vmatprep.subr.bf16.mxu0 0
  %393 = vmatpush1.bf16.msra.mxu0 0
  %394 = vmatprep.subr.bf16.mxu0 0
  %395 = vmatpush1.bf16.msra.mxu0 0
  %396 = vmatprep.subr.bf16.mxu0 0
  %397 = vmatpush1.bf16.msra.mxu0 0
  %398 = vmatprep.subr.bf16.mxu0 0
  %399 = vmatpush1.bf16.msra.mxu0 0
  %400 = vmatprep.subr.bf16.mxu0 0
  %401 = vmatpush1.bf16.msra.mxu0 0
  %402 = vmatprep.subr.bf16.mxu0 0
  %403 = vmatpush1.bf16.msra.mxu0 0
  %404 = vmatprep.subr.bf16.mxu0 0
  %405 = vmatpush1.bf16.msra.mxu0 0
  %406 = vmatprep.subr.bf16.mxu0 0
  %407 = vmatpush1.bf16.msra.mxu0 0
  %408 = vmatprep.subr.bf16.mxu0 0
  %409 = vmatpush1.bf16.msra.mxu0 0
  %410 = vmatprep.subr.bf16.mxu0 0
  %411 = vmatpush1.bf16.msra.mxu0 0
  %412 = vmatprep.subr.bf16.mxu0 0
  %413 = vmatpush1.bf16.msra.mxu0 0
  %414 = vmatprep.subr.bf16.mxu0 0
  %415 = vmatpush1.bf16.msra.mxu0 0
  %416 = vmatprep.mubr.bf16.mxu0 0
  %417 = vmatmul.mubr.bf16.gmra.mrb[0].mxu0 %v379
  %v418 = vpop.f32.mrb[0].mxu0
  %v419 = vadd.f32 0.0, %v418
  %v420 = vpop.f32.mrb[0].mxu0
  %v421 = vpop.f32.mrb[0].mxu0
  %v422 = vadd.f32 0.0, %v421
  %v423 = vpop.f32.mrb[0].mxu0
  %424 = vmatprep.mubr.bf16.mxu0 0
  %425 = vmatmul.mubr.bf16.gmra.mrb[0].mxu0 %v382
  %v426 = vpop.f32.mrb[0].mxu0
  %v427 = vadd.f32 0.0, %v426
  %v428 = vpop.f32.mrb[0].mxu0
  %v429 = vpop.f32.mrb[0].mxu0
  %v430 = vadd.f32 0.0, %v429
  %v431 = vpop.f32.mrb[0].mxu0
  %432 = vdwg.mxu0
  %v433 = vpack.c.bf16 %v422, %v419
  %v434 = vpack.c.bf16 %v430, %v427
  %435 = vst [vmem:[#allocation2 + $0x10] sm:$0xff] %v433
  %436 = vst [vmem:[#allocation2 + $0x28] sm:$0xff] %v434
  %v437 = vld [vmem:[#allocation2] sm:$0xff]
  %v438 = vld [vmem:[#allocation2 + $0x8] sm:$0xff]
  %v439 = vld [vmem:[#allocation2 + $0x10] sm:$0xff]
  %v440 = vld [vmem:[#allocation2 + $0x18] sm:$0xff]
  %v441 = vld [vmem:[#allocation2 + $0x20] sm:$0xff]
  %v442 = vld [vmem:[#allocation2 + $0x28] sm:$0xff]
  %v443 = vld [vmem:[%s5] sm:$0xf]
  %v444 = vld [vmem:[%s5 + $0x4] sm:$0xf]
  %v445 = vld [vmem:[%s5 + $0x8] sm:$0xf]
  %v446 = vld [vmem:[%s5 + $0xc] sm:$0xf]
  %v447 = vld [vmem:[%s5 + $0x10] sm:$0xf]
  %v448 = vld [vmem:[%s5 + $0x14] sm:$0xf]
  %v449 = vld [vmem:[%s5 + $0x18] sm:$0xf]
  %v450 = vld [vmem:[%s5 + $0x1c] sm:$0xf]
  %v451 = vld [vmem:[%s5 + $0x20] sm:$0xf]
  %v452 = vld [vmem:[%s5 + $0x24] sm:$0xf]
  %v453 = vld [vmem:[%s5 + $0x28] sm:$0xf]
  %v454 = vld [vmem:[%s5 + $0x2c] sm:$0xf]
  %v455 = vld [vmem:[%s5 + $0x30] sm:$0xf]
  %v456 = vld [vmem:[%s5 + $0x34] sm:$0xf]
  %v457 = vld [vmem:[%s5 + $0x38] sm:$0xf]
  %v458 = vld [vmem:[%s5 + $0x3c] sm:$0xf]
  %v459 = vld [vmem:[%s5 + $0x40] sm:$0xf]
  %v460 = vld [vmem:[%s5 + $0x44] sm:$0xf]
  %v461 = vld [vmem:[%s5 + $0x48] sm:$0xf]
  %v462 = vld [vmem:[%s5 + $0x4c] sm:$0xf]
  %v463 = vld [vmem:[%s5 + $0x50] sm:$0xf]
  %v464 = vld [vmem:[%s5 + $0x54] sm:$0xf]
  %v465 = vld [vmem:[%s5 + $0x58] sm:$0xf]
  %v466 = vld [vmem:[%s5 + $0x5c] sm:$0xf]
  %v467 = vld [vmem:[%s5 + $0x60] sm:$0xf]
  %v468 = vld [vmem:[%s5 + $0x64] sm:$0xf]
  %v469 = vld [vmem:[%s5 + $0x68] sm:$0xf]
  %v470 = vld [vmem:[%s5 + $0x6c] sm:$0xf]
  %v471 = vld [vmem:[%s5 + $0x70] sm:$0xf]
  %v472 = vld [vmem:[%s5 + $0x74] sm:$0xf]
  %v473 = vld [vmem:[%s5 + $0x78] sm:$0xf]
  %v474 = vld [vmem:[%s5 + $0x7c] sm:$0xf]
  %v475 = vld [vmem:[%s5 + $0x80] sm:$0xf]
  %v476 = vld [vmem:[%s5 + $0x84] sm:$0xf]
  %v477 = vld [vmem:[%s5 + $0x88] sm:$0xf]
  %v478 = vld [vmem:[%s5 + $0x8c] sm:$0xf]
  %v479 = vld [vmem:[%s5 + $0x90] sm:$0xf]
  %v480 = vld [vmem:[%s5 + $0x94] sm:$0xf]
  %v481 = vld [vmem:[%s5 + $0x98] sm:$0xf]
  %v482 = vld [vmem:[%s5 + $0x9c] sm:$0xf]
  %v483 = vld [vmem:[%s5 + $0xa0] sm:$0xf]
  %v484 = vld [vmem:[%s5 + $0xa4] sm:$0xf]
  %v485 = vld [vmem:[%s5 + $0xa8] sm:$0xf]
  %v486 = vld [vmem:[%s5 + $0xac] sm:$0xf]
  %v487 = vld [vmem:[%s5 + $0xb0] sm:$0xf]
  %v488 = vld [vmem:[%s5 + $0xb4] sm:$0xf]
  %v489 = vld [vmem:[%s5 + $0xb8] sm:$0xf]
  %v490 = vld [vmem:[%s5 + $0xbc] sm:$0xf]
  %v539 = vunpack.c.l.b16 %v443
  %v540 = vunpack.c.l.b16 %v444
  %v541 = vunpack.c.l.b16 %v445
  %v542 = vunpack.c.l.b16 %v446
  %v543 = vunpack.c.l.b16 %v447
  %v544 = vunpack.c.l.b16 %v448
  %v545 = vunpack.c.l.b16 %v449
  %v546 = vunpack.c.l.b16 %v450
  %v547 = vunpack.c.l.b16 %v451
  %v548 = vunpack.c.l.b16 %v452
  %v549 = vunpack.c.l.b16 %v453
  %v550 = vunpack.c.l.b16 %v454
  %v551 = vunpack.c.l.b16 %v455
  %v552 = vunpack.c.l.b16 %v456
  %v553 = vunpack.c.l.b16 %v457
  %v554 = vunpack.c.l.b16 %v458
  %v555 = vunpack.c.l.b16 %v459
  %v556 = vunpack.c.l.b16 %v460
  %v557 = vunpack.c.l.b16 %v461
  %v558 = vunpack.c.l.b16 %v462
  %v559 = vunpack.c.l.b16 %v463
  %v560 = vunpack.c.l.b16 %v464
  %v561 = vunpack.c.l.b16 %v465
  %v562 = vunpack.c.l.b16 %v466
  %v563 = vunpack.c.l.b16 %v467
  %v564 = vunpack.c.l.b16 %v468
  %v565 = vunpack.c.l.b16 %v469
  %v566 = vunpack.c.l.b16 %v470
  %v567 = vunpack.c.l.b16 %v471
  %v568 = vunpack.c.l.b16 %v472
  %v569 = vunpack.c.l.b16 %v473
  %v570 = vunpack.c.l.b16 %v474
  %v571 = vunpack.c.l.b16 %v475
  %v572 = vunpack.c.l.b16 %v476
  %v573 = vunpack.c.l.b16 %v477
  %v574 = vunpack.c.l.b16 %v478
  %v575 = vunpack.c.l.b16 %v479
  %v576 = vunpack.c.l.b16 %v480
  %v577 = vunpack.c.l.b16 %v481
  %v578 = vunpack.c.l.b16 %v482
  %v579 = vunpack.c.l.b16 %v483
  %v580 = vunpack.c.l.b16 %v484
  %v581 = vunpack.c.l.b16 %v485
  %v582 = vunpack.c.l.b16 %v486
  %v583 = vunpack.c.l.b16 %v487
  %v584 = vunpack.c.l.b16 %v488
  %v585 = vunpack.c.l.b16 %v489
  %v586 = vunpack.c.l.b16 %v490
  %v587 = vpack.c.b16 %v540, %v539
  %v588 = vpack.c.b16 %v542, %v541
  %v589 = vpack.c.b16 %v544, %v543
  %v590 = vpack.c.b16 %v546, %v545
  %v591 = vpack.c.b16 %v548, %v547
  %v592 = vpack.c.b16 %v550, %v549
  %v593 = vpack.c.b16 %v552, %v551
  %v594 = vpack.c.b16 %v554, %v553
  %v595 = vpack.c.b16 %v556, %v555
  %v596 = vpack.c.b16 %v558, %v557
  %v597 = vpack.c.b16 %v560, %v559
  %v598 = vpack.c.b16 %v562, %v561
  %v599 = vpack.c.b16 %v564, %v563
  %v600 = vpack.c.b16 %v566, %v565
  %v601 = vpack.c.b16 %v568, %v567
  %v602 = vpack.c.b16 %v570, %v569
  %v603 = vpack.c.b16 %v572, %v571
  %v604 = vpack.c.b16 %v574, %v573
  %v605 = vpack.c.b16 %v576, %v575
  %v606 = vpack.c.b16 %v578, %v577
  %v607 = vpack.c.b16 %v580, %v579
  %v608 = vpack.c.b16 %v582, %v581
  %v609 = vpack.c.b16 %v584, %v583
  %v610 = vpack.c.b16 %v586, %v585
  %635 = vmatprep.subr.bf16.mxu0 0
  %636 = vmatpush1.bf16.msra.mxu0 %v587
  %637 = vmatprep.subr.bf16.mxu0 0
  %638 = vmatpush1.bf16.msra.mxu0 %v588
  %639 = vmatprep.subr.bf16.mxu0 0
  %640 = vmatpush1.bf16.msra.mxu0 %v589
  %641 = vmatprep.subr.bf16.mxu0 0
  %642 = vmatpush1.bf16.msra.mxu0 %v590
  %643 = vmatprep.subr.bf16.mxu0 0
  %644 = vmatpush1.bf16.msra.mxu0 %v591
  %645 = vmatprep.subr.bf16.mxu0 0
  %646 = vmatpush1.bf16.msra.mxu0 %v592
  %647 = vmatprep.subr.bf16.mxu0 0
  %648 = vmatpush1.bf16.msra.mxu0 %v593
  %649 = vmatprep.subr.bf16.mxu0 0
  %650 = vmatpush1.bf16.msra.mxu0 %v594
  %651 = vmatprep.subr.bf16.mxu0 0
  %652 = vmatpush1.bf16.msra.mxu0 %v595
  %653 = vmatprep.subr.bf16.mxu0 0
  %654 = vmatpush1.bf16.msra.mxu0 %v596
  %655 = vmatprep.subr.bf16.mxu0 0
  %656 = vmatpush1.bf16.msra.mxu0 %v597
  %657 = vmatprep.subr.bf16.mxu0 0
  %658 = vmatpush1.bf16.msra.mxu0 %v598
  %659 = vmatprep.subr.bf16.mxu0 0
  %660 = vmatpush1.bf16.msra.mxu0 %v599
  %661 = vmatprep.subr.bf16.mxu0 0
  %662 = vmatpush1.bf16.msra.mxu0 %v600
  %663 = vmatprep.subr.bf16.mxu0 0
  %664 = vmatpush1.bf16.msra.mxu0 %v601
  %665 = vmatprep.subr.bf16.mxu0 0
  %666 = vmatpush1.bf16.msra.mxu0 %v602
  %667 = vmatprep.mubr.bf16.mxu0 %v438
  %668 = vmatmul.mubr.bf16.gmra.mrb[0].mxu0 %v437
  %v669 = vpop.f32.mrb[0].mxu0
  %v670 = vadd.f32 0.0, %v669
  %v671 = vpop.f32.mrb[0].mxu0
  %v672 = vpop.f32.mrb[0].mxu0
  %v673 = vadd.f32 0.0, %v672
  %v674 = vpop.f32.mrb[0].mxu0
  %675 = vmatprep.mubr.bf16.mxu0 %v441
  %676 = vmatmul.mubr.bf16.gmra.mrb[0].mxu0 %v440
  %v677 = vpop.f32.mrb[0].mxu0
  %v678 = vadd.f32 0.0, %v677
  %v679 = vpop.f32.mrb[0].mxu0
  %v680 = vpop.f32.mrb[0].mxu0
  %v681 = vadd.f32 0.0, %v680
  %v682 = vpop.f32.mrb[0].mxu0
  %683 = vdwg.mxu0
  %684 = vmatprep.subr.bf16.mxu0 0
  %685 = vmatpush1.bf16.msra.mxu0 %v603
  %686 = vmatprep.subr.bf16.mxu0 0
  %687 = vmatpush1.bf16.msra.mxu0 %v604
  %688 = vmatprep.subr.bf16.mxu0 0
  %689 = vmatpush1.bf16.msra.mxu0 %v605
  %690 = vmatprep.subr.bf16.mxu0 0
  %691 = vmatpush1.bf16.msra.mxu0 %v606
  %692 = vmatprep.subr.bf16.mxu0 0
  %693 = vmatpush1.bf16.msra.mxu0 %v607
  %694 = vmatprep.subr.bf16.mxu0 0
  %695 = vmatpush1.bf16.msra.mxu0 %v608
  %696 = vmatprep.subr.bf16.mxu0 0
  %697 = vmatpush1.bf16.msra.mxu0 %v609
  %698 = vmatprep.subr.bf16.mxu0 0
  %699 = vmatpush1.bf16.msra.mxu0 %v610
  %700 = vmatprep.subr.bf16.mxu0 0
  %701 = vmatpush1.bf16.msra.mxu0 0
  %702 = vmatprep.subr.bf16.mxu0 0
  %703 = vmatpush1.bf16.msra.mxu0 0
  %704 = vmatprep.subr.bf16.mxu0 0
  %705 = vmatpush1.bf16.msra.mxu0 0
  %706 = vmatprep.subr.bf16.mxu0 0
  %707 = vmatpush1.bf16.msra.mxu0 0
  %708 = vmatprep.subr.bf16.mxu0 0
  %709 = vmatpush1.bf16.msra.mxu0 0
  %710 = vmatprep.subr.bf16.mxu0 0
  %711 = vmatpush1.bf16.msra.mxu0 0
  %712 = vmatprep.subr.bf16.mxu0 0
  %713 = vmatpush1.bf16.msra.mxu0 0
  %714 = vmatprep.subr.bf16.mxu0 0
  %715 = vmatpush1.bf16.msra.mxu0 0
  %716 = vmatprep.mubr.bf16.mxu0 0
  %717 = vmatmul.mubr.bf16.gmra.mrb[0].mxu0 %v439
  %v718 = vpop.f32.mrb[0].mxu0
  %v719 = vadd.f32 %v670, %v718
  %v720 = vpop.f32.mrb[0].mxu0
  %v721 = vpop.f32.mrb[0].mxu0
  %v722 = vadd.f32 %v673, %v721
  %v723 = vpop.f32.mrb[0].mxu0
  %724 = vmatprep.mubr.bf16.mxu0 0
  %725 = vmatmul.mubr.bf16.gmra.mrb[0].mxu0 %v442
  %v726 = vpop.f32.mrb[0].mxu0
  %v727 = vadd.f32 %v678, %v726
  %v728 = vpop.f32.mrb[0].mxu0
  %v729 = vpop.f32.mrb[0].mxu0
  %v730 = vadd.f32 %v681, %v729
  %v731 = vpop.f32.mrb[0].mxu0
  %732 = vdwg.mxu0
  %v733 = vld [vmem:[%s3] sm:$0x1]
  %v734 = vld [vmem:[%s4] sm:$0x1]
  %735 = vmatprep.subr.mxu0 0.0
  %736 = vmatpush1.msra.mxu0 %v40
  %737 = vmatprep.subr.mxu0 0.0
  %738 = vmatpush1.msra.mxu0 %v41
  %739 = vmatprep.subr.mxu0 0.0
  %740 = vmatpush1.msra.mxu0 %v42
  %741 = vmatprep.subr.mxu0 0.0
  %742 = vmatpush1.msra.mxu0 %v43
  %743 = vmatprep.subr.mxu0 0.0
  %744 = vmatpush1.msra.mxu0 %v44
  %745 = vmatprep.subr.mxu0 0.0
  %746 = vmatpush1.msra.mxu0 %v45
  %747 = vmatprep.subr.mxu0 0.0
  %748 = vmatpush1.msra.mxu0 %v46
  %749 = vmatprep.subr.mxu0 0.0
  %750 = vmatpush1.msra.mxu0 %v47
  %751 = vmatprep.subr.mxu0 0.0
  %752 = vmatpush1.msra.mxu0 %v48
  %753 = vmatprep.subr.mxu0 0.0
  %754 = vmatpush1.msra.mxu0 %v49
  %755 = vmatprep.subr.mxu0 0.0
  %756 = vmatpush1.msra.mxu0 %v50
  %757 = vmatprep.subr.mxu0 0.0
  %758 = vmatpush1.msra.mxu0 %v51
  %759 = vmatprep.subr.mxu0 0.0
  %760 = vmatpush1.msra.mxu0 %v52
  %761 = vmatprep.subr.mxu0 0.0
  %762 = vmatpush1.msra.mxu0 %v53
  %763 = vmatprep.subr.mxu0 0.0
  %764 = vmatpush1.msra.mxu0 %v54
  %765 = vmatprep.subr.mxu0 0.0
  %766 = vmatpush1.msra.mxu0 %v55
  %767 = vmatprep.subr.mxu0 0.0
  %768 = vmatpush1.msra.mxu0 0.0
  %769 = vmatprep.subr.mxu0 0.0
  %770 = vmatpush1.msra.mxu0 0.0
  %771 = vmatprep.subr.mxu0 0.0
  %772 = vmatpush1.msra.mxu0 0.0
  %773 = vmatprep.subr.mxu0 0.0
  %774 = vmatpush1.msra.mxu0 0.0
  %775 = vmatprep.subr.mxu0 0.0
  %776 = vmatpush1.msra.mxu0 0.0
  %777 = vmatprep.subr.mxu0 0.0
  %778 = vmatpush1.msra.mxu0 0.0
  %779 = vmatprep.subr.mxu0 0.0
  %780 = vmatpush1.msra.mxu0 0.0
  %781 = vmatprep.subr.mxu0 0.0
  %782 = vmatpush1.msra.mxu0 0.0
  %783 = vmatprep.subr.mxu0 0.0
  %784 = vmatpush1.msra.mxu0 0.0
  %785 = vmatprep.subr.mxu0 0.0
  %786 = vmatpush1.msra.mxu0 0.0
  %787 = vmatprep.subr.mxu0 0.0
  %788 = vmatpush1.msra.mxu0 0.0
  %789 = vmatprep.subr.mxu0 0.0
  %790 = vmatpush1.msra.mxu0 0.0
  %791 = vmatprep.subr.mxu0 0.0
  %792 = vmatpush1.msra.mxu0 0.0
  %793 = vmatprep.subr.mxu0 0.0
  %794 = vmatpush1.msra.mxu0 0.0
  %795 = vmatprep.subr.mxu0 0.0
  %796 = vmatpush1.msra.mxu0 0.0
  %797 = vmatprep.subr.mxu0 0.0
  %798 = vmatpush1.msra.mxu0 0.0
  %799 = vmatprep.mubr.f32.mxu0 0.0
  %800 = vmatmul.mubr.f32.gmra.mrb[0].mxu0 %v719
  %v801 = vpop.f32.mrb[0].mxu0
  %v802 = vadd.f32 0.0, %v801
  %v803 = vpop.f32.mrb[0].mxu0
  %804 = vmatprep.mubr.f32.mxu0 0.0
  %805 = vmatmul.mubr.f32.gmra.mrb[0].mxu0 %v722
  %v806 = vpop.f32.mrb[0].mxu0
  %v807 = vadd.f32 0.0, %v806
  %v808 = vpop.f32.mrb[0].mxu0
  %809 = vmatprep.mubr.f32.mxu0 0.0
  %810 = vmatmul.mubr.f32.gmra.mrb[0].mxu0 %v727
  %v811 = vpop.f32.mrb[0].mxu0
  %v812 = vadd.f32 0.0, %v811
  %v813 = vpop.f32.mrb[0].mxu0
  %814 = vmatprep.mubr.f32.mxu0 0.0
  %815 = vmatmul.mubr.f32.gmra.mrb[0].mxu0 %v730
  %v816 = vpop.f32.mrb[0].mxu0
  %v817 = vadd.f32 0.0, %v816
  %v818 = vpop.f32.mrb[0].mxu0
  %819 = vdwg.mxu0
  %v820 = vadd.f32 %v802, %v807
  %v821 = vadd.f32 %v820, %v812
  %v822 = vadd.f32 %v821, %v817
  %v823 = vrot.slane %v822, 4
  %v824 = vadd.f32 %v822, %v823
  %v825 = vrot.slane %v824, 2
  %v826 = vadd.f32 %v824, %v825
  %v827 = vrot.slane %v826, 1
  %v828 = vadd.f32 %v826, %v827
  %v829 = vmul.f32 %v828, %v160
  %v830 = vsub.f32 %v719, %v829
  %v831 = vsub.f32 %v722, %v829
  %v832 = vsub.f32 %v727, %v829
  %v833 = vsub.f32 %v730, %v829
  %v834 = vmul.f32 %v830, %v830
  %v835 = vmul.f32 %v831, %v831
  %v836 = vmul.f32 %v832, %v832
  %v837 = vmul.f32 %v833, %v833
  %838 = vmatprep.subr.mxu0 0.0
  %839 = vmatpush1.msra.mxu0 %v40
  %840 = vmatprep.subr.mxu0 0.0
  %841 = vmatpush1.msra.mxu0 %v41
  %842 = vmatprep.subr.mxu0 0.0
  %843 = vmatpush1.msra.mxu0 %v42
  %844 = vmatprep.subr.mxu0 0.0
  %845 = vmatpush1.msra.mxu0 %v43
  %846 = vmatprep.subr.mxu0 0.0
  %847 = vmatpush1.msra.mxu0 %v44
  %848 = vmatprep.subr.mxu0 0.0
  %849 = vmatpush1.msra.mxu0 %v45
  %850 = vmatprep.subr.mxu0 0.0
  %851 = vmatpush1.msra.mxu0 %v46
  %852 = vmatprep.subr.mxu0 0.0
  %853 = vmatpush1.msra.mxu0 %v47
  %854 = vmatprep.subr.mxu0 0.0
  %855 = vmatpush1.msra.mxu0 %v48
  %856 = vmatprep.subr.mxu0 0.0
  %857 = vmatpush1.msra.mxu0 %v49
  %858 = vmatprep.subr.mxu0 0.0
  %859 = vmatpush1.msra.mxu0 %v50
  %860 = vmatprep.subr.mxu0 0.0
  %861 = vmatpush1.msra.mxu0 %v51
  %862 = vmatprep.subr.mxu0 0.0
  %863 = vmatpush1.msra.mxu0 %v52
  %864 = vmatprep.subr.mxu0 0.0
  %865 = vmatpush1.msra.mxu0 %v53
  %866 = vmatprep.subr.mxu0 0.0
  %867 = vmatpush1.msra.mxu0 %v54
  %868 = vmatprep.subr.mxu0 0.0
  %869 = vmatpush1.msra.mxu0 %v55
  %870 = vmatprep.subr.mxu0 0.0
  %871 = vmatpush1.msra.mxu0 0.0
  %872 = vmatprep.subr.mxu0 0.0
  %873 = vmatpush1.msra.mxu0 0.0
  %874 = vmatprep.subr.mxu0 0.0
  %875 = vmatpush1.msra.mxu0 0.0
  %876 = vmatprep.subr.mxu0 0.0
  %877 = vmatpush1.msra.mxu0 0.0
  %878 = vmatprep.subr.mxu0 0.0
  %879 = vmatpush1.msra.mxu0 0.0
  %880 = vmatprep.subr.mxu0 0.0
  %881 = vmatpush1.msra.mxu0 0.0
  %882 = vmatprep.subr.mxu0 0.0
  %883 = vmatpush1.msra.mxu0 0.0
  %884 = vmatprep.subr.mxu0 0.0
  %885 = vmatpush1.msra.mxu0 0.0
  %886 = vmatprep.subr.mxu0 0.0
  %887 = vmatpush1.msra.mxu0 0.0
  %888 = vmatprep.subr.mxu0 0.0
  %889 = vmatpush1.msra.mxu0 0.0
  %890 = vmatprep.subr.mxu0 0.0
  %891 = vmatpush1.msra.mxu0 0.0
  %892 = vmatprep.subr.mxu0 0.0
  %893 = vmatpush1.msra.mxu0 0.0
  %894 = vmatprep.subr.mxu0 0.0
  %895 = vmatpush1.msra.mxu0 0.0
  %896 = vmatprep.subr.mxu0 0.0
  %897 = vmatpush1.msra.mxu0 0.0
  %898 = vmatprep.subr.mxu0 0.0
  %899 = vmatpush1.msra.mxu0 0.0
  %900 = vmatprep.subr.mxu0 0.0
  %901 = vmatpush1.msra.mxu0 0.0
  %902 = vmatprep.mubr.f32.mxu0 0.0
  %903 = vmatmul.mubr.f32.gmra.mrb[0].mxu0 %v834
  %v904 = vpop.f32.mrb[0].mxu0
  %v905 = vadd.f32 0.0, %v904
  %v906 = vpop.f32.mrb[0].mxu0
  %907 = vmatprep.mubr.f32.mxu0 0.0
  %908 = vmatmul.mubr.f32.gmra.mrb[0].mxu0 %v835
  %v909 = vpop.f32.mrb[0].mxu0
  %v910 = vadd.f32 0.0, %v909
  %v911 = vpop.f32.mrb[0].mxu0
  %912 = vmatprep.mubr.f32.mxu0 0.0
  %913 = vmatmul.mubr.f32.gmra.mrb[0].mxu0 %v836
  %v914 = vpop.f32.mrb[0].mxu0
  %v915 = vadd.f32 0.0, %v914
  %v916 = vpop.f32.mrb[0].mxu0
  %917 = vmatprep.mubr.f32.mxu0 0.0
  %918 = vmatmul.mubr.f32.gmra.mrb[0].mxu0 %v837
  %v919 = vpop.f32.mrb[0].mxu0
  %v920 = vadd.f32 0.0, %v919
  %v921 = vpop.f32.mrb[0].mxu0
  %922 = vdwg.mxu0
  %v923 = vadd.f32 %v905, %v910
  %v924 = vadd.f32 %v923, %v915
  %v925 = vadd.f32 %v924, %v920
  %v926 = vrot.slane %v925, 4
  %v927 = vadd.f32 %v925, %v926
  %v928 = vrot.slane %v927, 2
  %v929 = vadd.f32 %v927, %v928
  %v930 = vrot.slane %v929, 1
  %v931 = vadd.f32 %v929, %v930
  %v932 = vmul.f32 %v931, %v160
  %v933 = vadd.f32 %v932, 1e-05
  %v934 = vrsqrt.pop %v933
  %v935 = vmul.f32 %v733, %v934
  %v936 = vmul.f32 %v829, %v935
  %v937 = vsub.f32 %v734, %v936
  %v939 = vlaneseq
  %v940 = vshrl.u32 %v939, 7
  %v941 = vsub.s32 0, %v940
  %v942 = vrot.slane %v935, %v941
  %v944 = vmul.f32 %v719, %v942
  %v945 = vmul.f32 %v722, %v942
  %v946 = vmul.f32 %v727, %v942
  %v947 = vmul.f32 %v730, %v942
  %v949 = vlaneseq
  %v950 = vshrl.u32 %v949, 7
  %v951 = vsub.s32 0, %v950
  %v952 = vrot.slane %v937, %v951
  %v954 = vadd.f32 %v944, %v952
  %v955 = vadd.f32 %v945, %v952
  %v956 = vadd.f32 %v946, %v952
  %v957 = vadd.f32 %v947, %v952
  %v958 = vmax.f32 %v954, 0.0
  %v959 = vmax.f32 %v955, 0.0
  %v960 = vmax.f32 %v956, 0.0
  %v961 = vmax.f32 %v957, 0.0
  %v962 = vpack.c.bf16 %v959, %v958
  %v963 = vpack.c.bf16 %v961, %v960
  %964 = vst [vmem:[#allocation2 + $0x8] sm:$0xff] %v962
  %965 = vst [vmem:[#allocation2 + $0x20] sm:$0xff] %v963
  %966 = vmatprep.subr.bf16.mxu0 0
  %967 = vmatpush1.bf16.msra.mxu0 %v962
  %968 = vmatprep.subr.bf16.mxu0 0
  %969 = vmatpush1.bf16.msra.mxu0 %v963
  %970 = vmatprep.subr.bf16.mxu0 0
  %971 = vmatpush1.bf16.msra.mxu0 0
  %972 = vmatprep.subr.bf16.mxu0 0
  %973 = vmatpush1.bf16.msra.mxu0 0
  %974 = vmatprep.subr.bf16.mxu0 0
  %975 = vmatpush1.bf16.msra.mxu0 0
  %976 = vmatprep.subr.bf16.mxu0 0
  %977 = vmatpush1.bf16.msra.mxu0 0
  %978 = vmatprep.subr.bf16.mxu0 0
  %979 = vmatpush1.bf16.msra.mxu0 0
  %980 = vmatprep.subr.bf16.mxu0 0
  %981 = vmatpush1.bf16.msra.mxu0 0
  %982 = vmatprep.subr.bf16.mxu0 0
  %983 = vmatpush1.bf16.msra.mxu0 0
  %984 = vmatprep.subr.bf16.mxu0 0
  %985 = vmatpush1.bf16.msra.mxu0 0
  %986 = vmatprep.subr.bf16.mxu0 0
  %987 = vmatpush1.bf16.msra.mxu0 0
  %988 = vmatprep.subr.bf16.mxu0 0
  %989 = vmatpush1.bf16.msra.mxu0 0
  %990 = vmatprep.subr.bf16.mxu0 0
  %991 = vmatpush1.bf16.msra.mxu0 0
  %992 = vmatprep.subr.bf16.mxu0 0
  %993 = vmatpush1.bf16.msra.mxu0 0
  %994 = vmatprep.subr.bf16.mxu0 0
  %995 = vmatpush1.bf16.msra.mxu0 0
  %996 = vmatprep.subr.bf16.mxu0 0
  %997 = vmatpush1.bf16.msra.mxu0 0
  %998 = vmatprep.mubr.bf16.mxu0 0
  %999 = vmatmul.mubr.bf16.gmra.mrb[0].mxu0 %v310
  %v1000 = vpop.f32.mrb[0].mxu0
  %v1001 = vadd.f32 0.0, %v1000
  %v1002 = vpop.f32.mrb[0].mxu0
  %v1003 = vpop.f32.mrb[0].mxu0
  %v1004 = vadd.f32 0.0, %v1003
  %v1005 = vpop.f32.mrb[0].mxu0
  %1006 = vmatprep.mubr.bf16.mxu0 0
  %1007 = vmatmul.mubr.bf16.gmra.mrb[0].mxu0 %v313
  %v1008 = vpop.f32.mrb[0].mxu0
  %v1009 = vadd.f32 0.0, %v1008
  %v1010 = vpop.f32.mrb[0].mxu0
  %v1011 = vpop.f32.mrb[0].mxu0
  %v1012 = vadd.f32 0.0, %v1011
  %v1013 = vpop.f32.mrb[0].mxu0
  %1014 = vdwg.mxu0
  %v1015 = vpack.c.bf16 %v1004, %v1001
  %v1016 = vpack.c.bf16 %v1012, %v1009
  %1017 = vst [vmem:[#allocation2] sm:$0xff] %v1015
  %1018 = vst [vmem:[#allocation2 + $0x18] sm:$0xff] %v1016
  %1019 = vmatprep.subr.bf16.mxu0 0
  %1020 = vmatpush1.bf16.msra.mxu0 %v962
  %1021 = vmatprep.subr.bf16.mxu0 0
  %1022 = vmatpush1.bf16.msra.mxu0 %v963
  %1023 = vmatprep.subr.bf16.mxu0 0
  %1024 = vmatpush1.bf16.msra.mxu0 0
  %1025 = vmatprep.subr.bf16.mxu0 0
  %1026 = vmatpush1.bf16.msra.mxu0 0
  %1027 = vmatprep.subr.bf16.mxu0 0
  %1028 = vmatpush1.bf16.msra.mxu0 0
  %1029 = vmatprep.subr.bf16.mxu0 0
  %1030 = vmatpush1.bf16.msra.mxu0 0
  %1031 = vmatprep.subr.bf16.mxu0 0
  %1032 = vmatpush1.bf16.msra.mxu0 0
  %1033 = vmatprep.subr.bf16.mxu0 0
  %1034 = vmatpush1.bf16.msra.mxu0 0
  %1035 = vmatprep.subr.bf16.mxu0 0
  %1036 = vmatpush1.bf16.msra.mxu0 0
  %1037 = vmatprep.subr.bf16.mxu0 0
  %1038 = vmatpush1.bf16.msra.mxu0 0
  %1039 = vmatprep.subr.bf16.mxu0 0
  %1040 = vmatpush1.bf16.msra.mxu0 0
  %1041 = vmatprep.subr.bf16.mxu0 0
  %1042 = vmatpush1.bf16.msra.mxu0 0
  %1043 = vmatprep.subr.bf16.mxu0 0
  %1044 = vmatpush1.bf16.msra.mxu0 0
  %1045 = vmatprep.subr.bf16.mxu0 0
  %1046 = vmatpush1.bf16.msra.mxu0 0
  %1047 = vmatprep.subr.bf16.mxu0 0
  %1048 = vmatpush1.bf16.msra.mxu0 0
  %1049 = vmatprep.subr.bf16.mxu0 0
  %1050 = vmatpush1.bf16.msra.mxu0 0
  %1051 = vmatprep.mubr.bf16.mxu0 0
  %1052 = vmatmul.mubr.bf16.gmra.mrb[0].mxu0 %v379
  %v1053 = vpop.f32.mrb[0].mxu0
  %v1054 = vadd.f32 0.0, %v1053
  %v1055 = vpop.f32.mrb[0].mxu0
  %v1056 = vpop.f32.mrb[0].mxu0
  %v1057 = vadd.f32 0.0, %v1056
  %v1058 = vpop.f32.mrb[0].mxu0
  %1059 = vmatprep.mubr.bf16.mxu0 0
  %1060 = vmatmul.mubr.bf16.gmra.mrb[0].mxu0 %v382
  %v1061 = vpop.f32.mrb[0].mxu0
  %v1062 = vadd.f32 0.0, %v1061
  %v1063 = vpop.f32.mrb[0].mxu0
  %v1064 = vpop.f32.mrb[0].mxu0
  %v1065 = vadd.f32 0.0, %v1064
  %v1066 = vpop.f32.mrb[0].mxu0
  %1067 = vdwg.mxu0
  %v1068 = vpack.c.bf16 %v1057, %v1054
  %v1069 = vpack.c.bf16 %v1065, %v1062
  %1070 = vst [vmem:[#allocation2 + $0x10] sm:$0xff] %v1068
  %1071 = vst [vmem:[#allocation2 + $0x28] sm:$0xff] %v1069
  %v1072 = vld [vmem:[#allocation2] sm:$0xff]
  %v1073 = vld [vmem:[#allocation2 + $0x8] sm:$0xff]
  %v1074 = vld [vmem:[#allocation2 + $0x10] sm:$0xff]
  %v1075 = vld [vmem:[#allocation2 + $0x18] sm:$0xff]
  %v1076 = vld [vmem:[#allocation2 + $0x20] sm:$0xff]
  %v1077 = vld [vmem:[#allocation2 + $0x28] sm:$0xff]
  %v1078 = vld [vmem:[%s6] sm:$0xf]
  %v1079 = vld [vmem:[%s6 + $0x4] sm:$0xf]
  %v1080 = vld [vmem:[%s6 + $0x8] sm:$0xf]
  %v1081 = vld [vmem:[%s6 + $0xc] sm:$0xf]
  %v1082 = vld [vmem:[%s6 + $0x10] sm:$0xf]
  %v1083 = vld [vmem:[%s6 + $0x14] sm:$0xf]
  %v1084 = vld [vmem:[%s6 + $0x18] sm:$0xf]
  %v1085 = vld [vmem:[%s6 + $0x1c] sm:$0xf]
  %v1086 = vld [vmem:[%s6 + $0x20] sm:$0xf]
  %v1087 = vld [vmem:[%s6 + $0x24] sm:$0xf]
  %v1088 = vld [vmem:[%s6 + $0x28] sm:$0xf]
  %v1089 = vld [vmem:[%s6 + $0x2c] sm:$0xf]
  %v1090 = vld [vmem:[%s6 + $0x30] sm:$0xf]
  %v1091 = vld [vmem:[%s6 + $0x34] sm:$0xf]
  %v1092 = vld [vmem:[%s6 + $0x38] sm:$0xf]
  %v1093 = vld [vmem:[%s6 + $0x3c] sm:$0xf]
  %v1094 = vld [vmem:[%s6 + $0x40] sm:$0xf]
  %v1095 = vld [vmem:[%s6 + $0x44] sm:$0xf]
  %v1096 = vld [vmem:[%s6 + $0x48] sm:$0xf]
  %v1097 = vld [vmem:[%s6 + $0x4c] sm:$0xf]
  %v1098 = vld [vmem:[%s6 + $0x50] sm:$0xf]
  %v1099 = vld [vmem:[%s6 + $0x54] sm:$0xf]
  %v1100 = vld [vmem:[%s6 + $0x58] sm:$0xf]
  %v1101 = vld [vmem:[%s6 + $0x5c] sm:$0xf]
  %v1102 = vld [vmem:[%s6 + $0x60] sm:$0xf]
  %v1103 = vld [vmem:[%s6 + $0x64] sm:$0xf]
  %v1104 = vld [vmem:[%s6 + $0x68] sm:$0xf]
  %v1105 = vld [vmem:[%s6 + $0x6c] sm:$0xf]
  %v1106 = vld [vmem:[%s6 + $0x70] sm:$0xf]
  %v1107 = vld [vmem:[%s6 + $0x74] sm:$0xf]
  %v1108 = vld [vmem:[%s6 + $0x78] sm:$0xf]
  %v1109 = vld [vmem:[%s6 + $0x7c] sm:$0xf]
  %v1110 = vld [vmem:[%s6 + $0x80] sm:$0xf]
  %v1111 = vld [vmem:[%s6 + $0x84] sm:$0xf]
  %v1112 = vld [vmem:[%s6 + $0x88] sm:$0xf]
  %v1113 = vld [vmem:[%s6 + $0x8c] sm:$0xf]
  %v1114 = vld [vmem:[%s6 + $0x90] sm:$0xf]
  %v1115 = vld [vmem:[%s6 + $0x94] sm:$0xf]
  %v1116 = vld [vmem:[%s6 + $0x98] sm:$0xf]
  %v1117 = vld [vmem:[%s6 + $0x9c] sm:$0xf]
  %v1118 = vld [vmem:[%s6 + $0xa0] sm:$0xf]
  %v1119 = vld [vmem:[%s6 + $0xa4] sm:$0xf]
  %v1120 = vld [vmem:[%s6 + $0xa8] sm:$0xf]
  %v1121 = vld [vmem:[%s6 + $0xac] sm:$0xf]
  %v1122 = vld [vmem:[%s6 + $0xb0] sm:$0xf]
  %v1123 = vld [vmem:[%s6 + $0xb4] sm:$0xf]
  %v1124 = vld [vmem:[%s6 + $0xb8] sm:$0xf]
  %v1125 = vld [vmem:[%s6 + $0xbc] sm:$0xf]
  %v1174 = vunpack.c.l.b16 %v1078
  %v1175 = vunpack.c.l.b16 %v1079
  %v1176 = vunpack.c.l.b16 %v1080
  %v1177 = vunpack.c.l.b16 %v1081
  %v1178 = vunpack.c.l.b16 %v1082
  %v1179 = vunpack.c.l.b16 %v1083
  %v1180 = vunpack.c.l.b16 %v1084
  %v1181 = vunpack.c.l.b16 %v1085
  %v1182 = vunpack.c.l.b16 %v1086
  %v1183 = vunpack.c.l.b16 %v1087
  %v1184 = vunpack.c.l.b16 %v1088
  %v1185 = vunpack.c.l.b16 %v1089
  %v1186 = vunpack.c.l.b16 %v1090
  %v1187 = vunpack.c.l.b16 %v1091
  %v1188 = vunpack.c.l.b16 %v1092
  %v1189 = vunpack.c.l.b16 %v1093
  %v1190 = vunpack.c.l.b16 %v1094
  %v1191 = vunpack.c.l.b16 %v1095
  %v1192 = vunpack.c.l.b16 %v1096
  %v1193 = vunpack.c.l.b16 %v1097
  %v1194 = vunpack.c.l.b16 %v1098
  %v1195 = vunpack.c.l.b16 %v1099
  %v1196 = vunpack.c.l.b16 %v1100
  %v1197 = vunpack.c.l.b16 %v1101
  %v1198 = vunpack.c.l.b16 %v1102
  %v1199 = vunpack.c.l.b16 %v1103
  %v1200 = vunpack.c.l.b16 %v1104
  %v1201 = vunpack.c.l.b16 %v1105
  %v1202 = vunpack.c.l.b16 %v1106
  %v1203 = vunpack.c.l.b16 %v1107
  %v1204 = vunpack.c.l.b16 %v1108
  %v1205 = vunpack.c.l.b16 %v1109
  %v1206 = vunpack.c.l.b16 %v1110
  %v1207 = vunpack.c.l.b16 %v1111
  %v1208 = vunpack.c.l.b16 %v1112
  %v1209 = vunpack.c.l.b16 %v1113
  %v1210 = vunpack.c.l.b16 %v1114
  %v1211 = vunpack.c.l.b16 %v1115
  %v1212 = vunpack.c.l.b16 %v1116
  %v1213 = vunpack.c.l.b16 %v1117
  %v1214 = vunpack.c.l.b16 %v1118
  %v1215 = vunpack.c.l.b16 %v1119
  %v1216 = vunpack.c.l.b16 %v1120
  %v1217 = vunpack.c.l.b16 %v1121
  %v1218 = vunpack.c.l.b16 %v1122
  %v1219 = vunpack.c.l.b16 %v1123
  %v1220 = vunpack.c.l.b16 %v1124
  %v1221 = vunpack.c.l.b16 %v1125
  %v1222 = vpack.c.b16 %v1175, %v1174
  %v1223 = vpack.c.b16 %v1177, %v1176
  %v1224 = vpack.c.b16 %v1179, %v1178
  %v1225 = vpack.c.b16 %v1181, %v1180
  %v1226 = vpack.c.b16 %v1183, %v1182
  %v1227 = vpack.c.b16 %v1185, %v1184
  %v1228 = vpack.c.b16 %v1187, %v1186
  %v1229 = vpack.c.b16 %v1189, %v1188
  %v1230 = vpack.c.b16 %v1191, %v1190
  %v1231 = vpack.c.b16 %v1193, %v1192
  %v1232 = vpack.c.b16 %v1195, %v1194
  %v1233 = vpack.c.b16 %v1197, %v1196
  %v1234 = vpack.c.b16 %v1199, %v1198
  %v1235 = vpack.c.b16 %v1201, %v1200
  %v1236 = vpack.c.b16 %v1203, %v1202
  %v1237 = vpack.c.b16 %v1205, %v1204
  %v1238 = vpack.c.b16 %v1207, %v1206
  %v1239 = vpack.c.b16 %v1209, %v1208
  %v1240 = vpack.c.b16 %v1211, %v1210
  %v1241 = vpack.c.b16 %v1213, %v1212
  %v1242 = vpack.c.b16 %v1215, %v1214
  %v1243 = vpack.c.b16 %v1217, %v1216
  %v1244 = vpack.c.b16 %v1219, %v1218
  %v1245 = vpack.c.b16 %v1221, %v1220
  %1270 = vmatprep.subr.bf16.mxu0 0
  %1271 = vmatpush1.bf16.msra.mxu0 %v1222
  %1272 = vmatprep.subr.bf16.mxu0 0
  %1273 = vmatpush1.bf16.msra.mxu0 %v1223
  %1274 = vmatprep.subr.bf16.mxu0 0
  %1275 = vmatpush1.bf16.msra.mxu0 %v1224
  %1276 = vmatprep.subr.bf16.mxu0 0
  %1277 = vmatpush1.bf16.msra.mxu0 %v1225
  %1278 = vmatprep.subr.bf16.mxu0 0
  %1279 = vmatpush1.bf16.msra.mxu0 %v1226
  %1280 = vmatprep.subr.bf16.mxu0 0
  %1281 = vmatpush1.bf16.msra.mxu0 %v1227
  %1282 = vmatprep.subr.bf16.mxu0 0
  %1283 = vmatpush1.bf16.msra.mxu0 %v1228
  %1284 = vmatprep.subr.bf16.mxu0 0
  %1285 = vmatpush1.bf16.msra.mxu0 %v1229
  %1286 = vmatprep.subr.bf16.mxu0 0
  %1287 = vmatpush1.bf16.msra.mxu0 %v1230
  %1288 = vmatprep.subr.bf16.mxu0 0
  %1289 = vmatpush1.bf16.msra.mxu0 %v1231
  %1290 = vmatprep.subr.bf16.mxu0 0
  %1291 = vmatpush1.bf16.msra.mxu0 %v1232
  %1292 = vmatprep.subr.bf16.mxu0 0
  %1293 = vmatpush1.bf16.msra.mxu0 %v1233
  %1294 = vmatprep.subr.bf16.mxu0 0
  %1295 = vmatpush1.bf16.msra.mxu0 %v1234
  %1296 = vmatprep.subr.bf16.mxu0 0
  %1297 = vmatpush1.bf16.msra.mxu0 %v1235
  %1298 = vmatprep.subr.bf16.mxu0 0
  %1299 = vmatpush1.bf16.msra.mxu0 %v1236
  %1300 = vmatprep.subr.bf16.mxu0 0
  %1301 = vmatpush1.bf16.msra.mxu0 %v1237
  %1302 = vmatprep.mubr.bf16.mxu0 %v1073
  %1303 = vmatmul.mubr.bf16.gmra.mrb[0].mxu0 %v1072
  %v1304 = vpop.f32.mrb[0].mxu0
  %v1305 = vadd.f32 %v36, %v1304
  %v1306 = vpop.f32.mrb[0].mxu0
  %v1307 = vpop.f32.mrb[0].mxu0
  %v1308 = vadd.f32 %v37, %v1307
  %v1309 = vpop.f32.mrb[0].mxu0
  %1310 = vmatprep.mubr.bf16.mxu0 %v1076
  %1311 = vmatmul.mubr.bf16.gmra.mrb[0].mxu0 %v1075
  %v1312 = vpop.f32.mrb[0].mxu0
  %v1313 = vadd.f32 %v38, %v1312
  %v1314 = vpop.f32.mrb[0].mxu0
  %v1315 = vpop.f32.mrb[0].mxu0
  %v1316 = vadd.f32 %v39, %v1315
  %v1317 = vpop.f32.mrb[0].mxu0
  %1318 = vdwg.mxu0
  %1319 = vmatprep.subr.bf16.mxu0 0
  %1320 = vmatpush1.bf16.msra.mxu0 %v1238
  %1321 = vmatprep.subr.bf16.mxu0 0
  %1322 = vmatpush1.bf16.msra.mxu0 %v1239
  %1323 = vmatprep.subr.bf16.mxu0 0
  %1324 = vmatpush1.bf16.msra.mxu0 %v1240
  %1325 = vmatprep.subr.bf16.mxu0 0
  %1326 = vmatpush1.bf16.msra.mxu0 %v1241
  %1327 = vmatprep.subr.bf16.mxu0 0
  %1328 = vmatpush1.bf16.msra.mxu0 %v1242
  %1329 = vmatprep.subr.bf16.mxu0 0
  %1330 = vmatpush1.bf16.msra.mxu0 %v1243
  %1331 = vmatprep.subr.bf16.mxu0 0
  %1332 = vmatpush1.bf16.msra.mxu0 %v1244
  %1333 = vmatprep.subr.bf16.mxu0 0
  %1334 = vmatpush1.bf16.msra.mxu0 %v1245
  %1335 = vmatprep.subr.bf16.mxu0 0
  %1336 = vmatpush1.bf16.msra.mxu0 0
  %1337 = vmatprep.subr.bf16.mxu0 0
  %1338 = vmatpush1.bf16.msra.mxu0 0
  %1339 = vmatprep.subr.bf16.mxu0 0
  %1340 = vmatpush1.bf16.msra.mxu0 0
  %1341 = vmatprep.subr.bf16.mxu0 0
  %1342 = vmatpush1.bf16.msra.mxu0 0
  %1343 = vmatprep.subr.bf16.mxu0 0
  %1344 = vmatpush1.bf16.msra.mxu0 0
  %1345 = vmatprep.subr.bf16.mxu0 0
  %1346 = vmatpush1.bf16.msra.mxu0 0
  %1347 = vmatprep.subr.bf16.mxu0 0
  %1348 = vmatpush1.bf16.msra.mxu0 0
  %1349 = vmatprep.subr.bf16.mxu0 0
  %1350 = vmatpush1.bf16.msra.mxu0 0
  %1351 = vmatprep.mubr.bf16.mxu0 0
  %1352 = vmatmul.mubr.bf16.gmra.mrb[0].mxu0 %v1074
  %v1353 = vpop.f32.mrb[0].mxu0
  %v1354 = vadd.f32 %v1305, %v1353
  %v1355 = vpop.f32.mrb[0].mxu0
  %v1356 = vpop.f32.mrb[0].mxu0
  %v1357 = vadd.f32 %v1308, %v1356
  %v1358 = vpop.f32.mrb[0].mxu0
  %1359 = vmatprep.mubr.bf16.mxu0 0
  %1360 = vmatmul.mubr.bf16.gmra.mrb[0].mxu0 %v1077
  %v1361 = vpop.f32.mrb[0].mxu0
  %v1362 = vadd.f32 %v1313, %v1361
  %v1363 = vpop.f32.mrb[0].mxu0
  %v1364 = vpop.f32.mrb[0].mxu0
  %v1365 = vadd.f32 %v1316, %v1364
  %v1366 = vpop.f32.mrb[0].mxu0
  %1367 = vdwg.mxu0
  %1368 = vst [vmem:[%s10] sm:$0xff] %v1354
  %1369 = vst [vmem:[%s10 + $0x8] sm:$0xff] %v1357
  %1370 = vst [vmem:[%s10 + $0x10] sm:$0xff] %v1362
  %1371 = vst [vmem:[%s10 + $0x18] sm:$0xff] %v1365
  // Predicated region
  $region42: #{resblock_forward.1} parent=0 // pred_check
    _
  $region43: #{resblock_forward.1} parent=0 // pred_check_branch
    %1373 = sbr.rel (0) target = $region45
  $region44: #{resblock_forward.1} parent=0 // pred_region
    _
  $region45: #{resblock_forward.1} parent=0 // pred_fallthru
    _
  // Predicated region
  $region46: #{resblock_forward.1} parent=0 // pred_check
    _
  $region47: #{resblock_forward.1} parent=0 // pred_check_branch
    %1375 = sbr.rel (0) target = $region49
  $region48: #{resblock_forward.1} parent=0 // pred_region
    _
  $region49: #{resblock_forward.1} parent=0 // pred_fallthru
    _

</llo_original>
